<compile_context>
chip_gen: v5e
topology: v5e:2x2
jax: 0.10.0
libtpu: 0.0.40
codegen_flags: <defaults>
</compile_context>

<pallas_src>
import functools
import math

import jax
import jax.numpy as jnp
from jax.experimental import pallas as pl
from jax.experimental.pallas import tpu as pltpu


def _attn_scores_kernel(q_ref, kt_ref, o_ref, *, inv_sqrt_scale, compute_dtype):
    # q_ref: (nb, tq, D)   kt_ref: (nb, D, Sk)   o_ref: (nb, tq, Sk)
    # Fold 1/sqrt(scale) into q (tq*D elements, not tq*Sk), then cast to the MXU dtype.
    q = (q_ref[...] * inv_sqrt_scale).astype(compute_dtype)
    kt = kt_ref[...]

    # scores = q @ K^T, batched over the head-block axis; f32 accumulation on the MXU.
    s = jnp.einsum("bqd,bdk->bqk", q, kt, preferred_element_type=jnp.float32)

    # TODO(synk): attn_mask (masked_fill with -inf) not implemented; module default is None.

    # Numerically stable softmax over the last (lane) axis.
    m = jnp.max(s, axis=-1, keepdims=True)
    p = jnp.exp(s - m)
    denom = jnp.sum(p, axis=-1, keepdims=True)
    inv = pl.reciprocal(denom, approx=True)   # EUP slot: ~free vs a full-tile divide

    # Dropout(att_dropout) is identity in eval mode.
    # TODO(synk): training-mode attention dropout (pltpu.prng_seed/prng_random_bits).
    o_ref[...] = (p * inv).astype(o_ref.dtype)


def _default_vmem_limit_bytes():
    phys = 64 * 1024 * 1024
    try:
        info = pltpu.get_tpu_info()
        phys = getattr(info, "vmem_capacity_bytes", phys) or phys
    except Exception:
        pass
    # v5e/v6e (128 MiB physical) -> 96 MiB limit; v7x (64 MiB) -> 48 MiB limit.
    return min(96 * 1024 * 1024, (phys * 3) // 4)


def _pick_head_block(BH, tq, Sk, D, q_isize, k_isize, o_isize, budget_bytes):
    """Largest divisor of BH whose (double-buffered blocks + f32 intermediates) fit."""
    best = 1
    for nb in range(1, BH + 1):
        if BH % nb:
            continue
        blocks = 2 * nb * (tq * D * q_isize + D * Sk * k_isize + tq * Sk * o_isize)
        interm = 2 * nb * tq * Sk * 4   # f32 score + prob tiles in flight
        if blocks + interm <= budget_bytes:
            best = nb
    return best


def attention(q, k, v=None, attn_mask=None, *, scale=64, tile_q=512,
              compute_dtype=jnp.bfloat16, out_dtype=None):
    """softmax(q @ k^T / sqrt(scale)) — matches the PyTorch `attention.forward`.
    The reference forward never uses `v`; it is accepted and ignored here too."""
    assert attn_mask is None, "attn_mask path not implemented"  # TODO(synk)
    del v  # unused by the reference module

    *lead, Sq, D = q.shape
    *lead_k, Sk, Dk = k.shape
    assert Dk == D and tuple(lead_k) == tuple(lead), "q/k leading dims & feature dim must match"
    BH = math.prod(lead) if lead else 1
    out_dtype = q.dtype if out_dtype is None else out_dtype

    q3 = q.reshape(BH, Sq, D)
    # Pre-transpose K to (BH, D, Sk): MXU-ready, lane-dense RHS (no in-kernel transpose),
    # pre-cast to the matmul dtype so its HBM->VMEM traffic is halved.
    kt3 = jnp.swapaxes(k.reshape(BH, Sk, D), 1, 2).astype(compute_dtype)

    # Query-row tile; pad Sq so the grid divides evenly, slice the pad off afterwards.
    tq = Sq if Sq <= tile_q else tile_q
    pad_q = (-Sq) % tq
    if pad_q:
        q3 = jnp.pad(q3, ((0, 0), (0, pad_q), (0, 0)))
    Sq_p = Sq + pad_q

    vmem_limit = _default_vmem_limit_bytes()
    nb = _pick_head_block(
        BH, tq, Sk, D,
        jnp.dtype(q.dtype).itemsize,
        jnp.dtype(compute_dtype).itemsize,
        jnp.dtype(out_dtype).itemsize,
        budget_bytes=vmem_limit // 2,
    )

    grid = (BH // nb, Sq_p // tq)

    # TODO(synk): for very long key lengths (Sk >~ 4k, esp. on v7x's 64 MiB VMEM), add an
    # Sk grid axis with online softmax instead of keeping full K / score rows resident.

    cost = pl.CostEstimate(
        flops=2 * BH * Sq_p * Sk * D + 4 * BH * Sq_p * Sk,
        transcendentals=BH * Sq_p * Sk + BH * Sq_p,
        bytes_accessed=(q3.size * jnp.dtype(q3.dtype).itemsize
                        + kt3.size * jnp.dtype(kt3.dtype).itemsize
                        + BH * Sq_p * Sk * jnp.dtype(out_dtype).itemsize),
    )

    kernel = functools.partial(_attn_scores_kernel,
                               inv_sqrt_scale=1.0 / math.sqrt(scale),
                               compute_dtype=compute_dtype)

    out = pl.pallas_call(
        kernel,
        out_shape=jax.ShapeDtypeStruct((BH, Sq_p, Sk), out_dtype),
        grid_spec=pltpu.PrefetchScalarGridSpec(
            num_scalar_prefetch=0,
            grid=grid,
            in_specs=[
                pl.BlockSpec((nb, tq, D), lambda b, i: (b, i, 0)),   # q head-block row-tile
                pl.BlockSpec((nb, D, Sk), lambda b, i: (b, 0, 0)),   # K^T, resident across q tiles
            ],
            out_specs=pl.BlockSpec((nb, tq, Sk), lambda b, i: (b, i, 0)),  # lane-dense store
        ),
        compiler_params=pltpu.CompilerParams(
            # BH is the megacore-parallel candidate (keeps per-head K reuse on v7x);
            # the q-tile axis is left "arbitrary".
            dimension_semantics=("parallel", "arbitrary"),
            vmem_limit_bytes=vmem_limit),
        cost_estimate=cost,
    )(q3, kt3)

    if pad_q:
        out = out[:, :Sq, :]
    return out.reshape(*lead, Sq, Sk)


def reference(q, k, scale=64):
    s = jnp.einsum("...qd,...kd->...qk", q, k) / math.sqrt(scale)
    return jax.nn.softmax(s, axis=-1)


if __name__ == "__main__":
    key = jax.random.PRNGKey(0)
    kq, kk, kv = jax.random.split(key, 3)

    # Small shapes consistent with the module: batch=2, heads=4, seq=128, d=64 (scale=64).
    batch, heads, seq, d = 2, 4, 128, 64
    q = jax.random.normal(kq, (batch, heads, seq, d), jnp.float32)
    k = jax.random.normal(kk, (batch, heads, seq, d), jnp.float32)
    v = jax.random.normal(kv, (batch, heads, seq, d), jnp.float32)  # unused, as in the module

    out = attention(q, k, v, scale=64)
    jax.block_until_ready(out)

    assert out.shape == (batch, heads, seq, seq)
    ref = reference(q, k, scale=64)
    # bf16 MXU operands + approx reciprocal -> relaxed tolerance vs the f32 reference.
    assert jnp.allclose(out, ref, atol=3e-2, rtol=0.0), "mismatch vs reference"
    assert jnp.allclose(out.sum(-1), 1.0, atol=5e-3), "softmax rows must sum to 1"

    print("KERNEL_OK")
</pallas_src>

<mosaic_0001>
module attributes {stable_mosaic.version = 11 : i64} {
  func.func @_attn_scores_kernel(%arg0: i32, %arg1: i32, %arg2: memref<8x128x64xf32, #tpu.memory_space<vmem>>, %arg3: memref<8x64x128xbf16, #tpu.memory_space<vmem>>, %arg4: memref<8x128x128xf32, #tpu.memory_space<vmem>>) attributes {dimension_semantics = [#tpu.dimension_semantics<parallel>, #tpu.dimension_semantics<arbitrary>], iteration_bounds = array<i64: 1, 1>, scalar_prefetch = 0 : i64, scratch_operands = 0 : i64, tpu.core_type = #tpu.core_type<tc>, window_params = [{transform_indices = @transform_0, window_bounds = array<i64: 8, 128, 64>}, {transform_indices = @transform_1, window_bounds = array<i64: 8, 64, 128>}, {transform_indices = @transform_2, window_bounds = array<i64: 8, 128, 128>}]} {
    %c0 = arith.constant 0 : index
    %c0_0 = arith.constant 0 : index
    %c0_1 = arith.constant 0 : index
    %0 = vector.load %arg2[%c0, %c0_0, %c0_1] : memref<8x128x64xf32, #tpu.memory_space<vmem>>, vector<8x128x64xf32>
    %cst = arith.constant 1.250000e-01 : f32
    %1 = vector.broadcast %cst : f32 to vector<8x128x64xf32>
    %2 = arith.mulf %0, %1 : vector<8x128x64xf32>
    %3 = arith.truncf %2 : vector<8x128x64xf32> to vector<8x128x64xbf16>
    %c0_2 = arith.constant 0 : index
    %c0_3 = arith.constant 0 : index
    %c0_4 = arith.constant 0 : index
    %4 = vector.load %arg3[%c0_2, %c0_3, %c0_4] : memref<8x64x128xbf16, #tpu.memory_space<vmem>>, vector<8x64x128xbf16>
    "tpu.trace_start"() <{level = 10 : i32, message = "bqd,bdk->bqk"}> : () -> ()
    %cst_5 = arith.constant dense<0.000000e+00> : vector<8x128x128xf32>
    %5 = tpu.matmul %3, %4, %cst_5 {dimension_numbers = #tpu.dot_dimension_numbers<[2], [1], [1], [2], [0, 0, 0, 1, 1, 2], [0], [0]>} : vector<8x128x64xbf16>, vector<8x64x128xbf16>, vector<8x128x128xf32> -> vector<8x128x128xf32>
    "tpu.trace_stop"() : () -> ()
    %cst_6 = arith.constant dense<0xFF800000> : vector<8x128xf32>
    %6 = vector.multi_reduction <maximumf>, %5, %cst_6 [2] : vector<8x128x128xf32> to vector<8x128xf32>
    %7 = vector.shape_cast %6 : vector<8x128xf32> to vector<8x128x1xf32>
    %8 = vector.broadcast %7 : vector<8x128x1xf32> to vector<8x128x128xf32>
    %9 = arith.subf %5, %8 : vector<8x128x128xf32>
    %10 = math.exp %9 : vector<8x128x128xf32>
    %cst_7 = arith.constant dense<0.000000e+00> : vector<8x128xf32>
    %11 = vector.multi_reduction <add>, %10, %cst_7 [2] : vector<8x128x128xf32> to vector<8x128xf32>
    %12 = vector.shape_cast %11 : vector<8x128xf32> to vector<8x128x1xf32>
    %13 = tpu.reciprocal %12 {approx = true} : vector<8x128x1xf32> -> vector<8x128x1xf32>
    %14 = vector.broadcast %13 : vector<8x128x1xf32> to vector<8x128x128xf32>
    %15 = arith.mulf %10, %14 : vector<8x128x128xf32>
    %c0_8 = arith.constant 0 : index
    %c0_9 = arith.constant 0 : index
    %c0_10 = arith.constant 0 : index
    %16 = vector.load %arg4[%c0_8, %c0_9, %c0_10] : memref<8x128x128xf32, #tpu.memory_space<vmem>>, vector<8x128x128xf32>
    tpu.vector_store %arg4[%c0_8, %c0_9, %c0_10], %15 {strides = array<i32>} : memref<8x128x128xf32, #tpu.memory_space<vmem>>, vector<8x128x128xf32>,
    return
  }
  func.func @transform_0(%arg0: i32, %arg1: i32) -> (i32, i32, i32) {
    %c0_i32 = arith.constant 0 : i32
    %c0_i32_0 = arith.constant 0 : i32
    return %arg0, %arg1, %c0_i32 : i32, i32, i32
  }
  func.func @transform_1(%arg0: i32, %arg1: i32) -> (i32, i32, i32) {
    %c0_i32 = arith.constant 0 : i32
    %c0_i32_0 = arith.constant 0 : i32
    %c0_i32_1 = arith.constant 0 : i32
    return %arg0, %c0_i32, %c0_i32_0 : i32, i32, i32
  }
  func.func @transform_2(%arg0: i32, %arg1: i32) -> (i32, i32, i32) {
    %c0_i32 = arith.constant 0 : i32
    %c0_i32_0 = arith.constant 0 : i32
    return %arg0, %arg1, %c0_i32 : i32, i32, i32
  }
}

</mosaic_0001>

<llo_original>
// kernel: tpu_custom_call.1
$region0: #{tpu_custom_call.1}
  #allocation0 [shape = 'u32[]', space=smem, size = 0x4, offset = 0x4, fixed_abs, tag = 'smem constant byte address 0x4 - core index']
  #allocation1 [shape = 'u32[72,128]{1,0:T(1,128)}', space=vmem, size = 0x9000, scoped, tag = 'internal scratch']
  %s0 = inlined_call_operand.vmem [shape: f32[8,128,64], index: 0, kind: input, shape index: {}]
  %s1 = inlined_call_operand.vmem [shape: bf16[8,64,128], index: 1, kind: input, shape index: {}]
  %s2 = inlined_call_operand.hbm [shape: f32[8,128,128], index: 2, kind: output, shape index: {}]
  %s3 = sld [smem:[#allocation0]]
  $region18: #{tpu_custom_call.1} parent=0
    _
  %s5 = ssub.s32 1, %s3
  %s6 = scalar_select 0, %s5, %s3
  $region1: #{tpu_custom_call.1} parent=0
    #allocation2 [shape = 'u8[524288]{0}', space=vmem, size = 0x80000, scoped, tag = 'output window, operand 0, single buffered']
    #allocation3 [shape = 's32[1]{0}', space=sflag, size = 0x4, scoped, tag = 'scoped memory for tpu_custom_call.1']
    %7 = vsyncpa [#allocation3], 0
    // Predicated region
    $region2: #{tpu_custom_call.1} parent=1 // pred_check
      _
    $region3: #{tpu_custom_call.1} parent=1 // pred_check_branch
      %9 = sbr.rel (0) target = $region5
    $region4: #{tpu_custom_call.1} parent=1 // pred_region
      _
    $region5: #{tpu_custom_call.1} parent=1 // pred_fallthru
      _
    // Predicated region
    $region6: #{tpu_custom_call.1} parent=1 // pred_check
      _
    $region7: #{tpu_custom_call.1} parent=1 // pred_check_branch
      %11 = sbr.rel (0) target = $region9
    $region8: #{tpu_custom_call.1} parent=1 // pred_region
      _
    $region9: #{tpu_custom_call.1} parent=1 // pred_fallthru
      _
    %v13 = vld [vmem:[%s0] sm:$0xff]
    %v14 = vld [vmem:[%s0 + $0x8] sm:$0xff]
    %v15 = vld [vmem:[%s0 + $0x10] sm:$0xff]
    %v16 = vld [vmem:[%s0 + $0x18] sm:$0xff]
    %v17 = vld [vmem:[%s0 + $0x20] sm:$0xff]
    %v18 = vld [vmem:[%s0 + $0x28] sm:$0xff]
    %v19 = vld [vmem:[%s0 + $0x30] sm:$0xff]
    %v20 = vld [vmem:[%s0 + $0x38] sm:$0xff]
    %v21 = vld [vmem:[%s0 + $0x40] sm:$0xff]
    %v22 = vld [vmem:[%s0 + $0x48] sm:$0xff]
    %v23 = vld [vmem:[%s0 + $0x50] sm:$0xff]
    %v24 = vld [vmem:[%s0 + $0x58] sm:$0xff]
    %v25 = vld [vmem:[%s0 + $0x60] sm:$0xff]
    %v26 = vld [vmem:[%s0 + $0x68] sm:$0xff]
    %v27 = vld [vmem:[%s0 + $0x70] sm:$0xff]
    %v28 = vld [vmem:[%s0 + $0x78] sm:$0xff]
    %v29 = vld [vmem:[%s0 + $0x80] sm:$0xff]
    %v30 = vld [vmem:[%s0 + $0x88] sm:$0xff]
    %v31 = vld [vmem:[%s0 + $0x90] sm:$0xff]
    %v32 = vld [vmem:[%s0 + $0x98] sm:$0xff]
    %v33 = vld [vmem:[%s0 + $0xa0] sm:$0xff]
    %v34 = vld [vmem:[%s0 + $0xa8] sm:$0xff]
    %v35 = vld [vmem:[%s0 + $0xb0] sm:$0xff]
    %v36 = vld [vmem:[%s0 + $0xb8] sm:$0xff]
    %v37 = vld [vmem:[%s0 + $0xc0] sm:$0xff]
    %v38 = vld [vmem:[%s0 + $0xc8] sm:$0xff]
    %v39 = vld [vmem:[%s0 + $0xd0] sm:$0xff]
    %v40 = vld [vmem:[%s0 + $0xd8] sm:$0xff]
    %v41 = vld [vmem:[%s0 + $0xe0] sm:$0xff]
    %v42 = vld [vmem:[%s0 + $0xe8] sm:$0xff]
    %v43 = vld [vmem:[%s0 + $0xf0] sm:$0xff]
    %v44 = vld [vmem:[%s0 + $0xf8] sm:$0xff]
    %v45 = vld [vmem:[%s0 + $0x100] sm:$0xff]
    %v46 = vld [vmem:[%s0 + $0x108] sm:$0xff]
    %v47 = vld [vmem:[%s0 + $0x110] sm:$0xff]
    %v48 = vld [vmem:[%s0 + $0x118] sm:$0xff]
    %v49 = vld [vmem:[%s0 + $0x120] sm:$0xff]
    %v50 = vld [vmem:[%s0 + $0x128] sm:$0xff]
    %v51 = vld [vmem:[%s0 + $0x130] sm:$0xff]
    %v52 = vld [vmem:[%s0 + $0x138] sm:$0xff]
    %v53 = vld [vmem:[%s0 + $0x140] sm:$0xff]
    %v54 = vld [vmem:[%s0 + $0x148] sm:$0xff]
    %v55 = vld [vmem:[%s0 + $0x150] sm:$0xff]
    %v56 = vld [vmem:[%s0 + $0x158] sm:$0xff]
    %v57 = vld [vmem:[%s0 + $0x160] sm:$0xff]
    %v58 = vld [vmem:[%s0 + $0x168] sm:$0xff]
    %v59 = vld [vmem:[%s0 + $0x170] sm:$0xff]
    %v60 = vld [vmem:[%s0 + $0x178] sm:$0xff]
    %v61 = vld [vmem:[%s0 + $0x180] sm:$0xff]
    %v62 = vld [vmem:[%s0 + $0x188] sm:$0xff]
    %v63 = vld [vmem:[%s0 + $0x190] sm:$0xff]
    %v64 = vld [vmem:[%s0 + $0x198] sm:$0xff]
    %v65 = vld [vmem:[%s0 + $0x1a0] sm:$0xff]
    %v66 = vld [vmem:[%s0 + $0x1a8] sm:$0xff]
    %v67 = vld [vmem:[%s0 + $0x1b0] sm:$0xff]
    %v68 = vld [vmem:[%s0 + $0x1b8] sm:$0xff]
    %v69 = vld [vmem:[%s0 + $0x1c0] sm:$0xff]
    %v70 = vld [vmem:[%s0 + $0x1c8] sm:$0xff]
    %v71 = vld [vmem:[%s0 + $0x1d0] sm:$0xff]
    %v72 = vld [vmem:[%s0 + $0x1d8] sm:$0xff]
    %v73 = vld [vmem:[%s0 + $0x1e0] sm:$0xff]
    %v74 = vld [vmem:[%s0 + $0x1e8] sm:$0xff]
    %v75 = vld [vmem:[%s0 + $0x1f0] sm:$0xff]
    %v76 = vld [vmem:[%s0 + $0x1f8] sm:$0xff]
    %v77 = vld [vmem:[%s0 + $0x200] sm:$0xff]
    %v78 = vld [vmem:[%s0 + $0x208] sm:$0xff]
    %v79 = vld [vmem:[%s0 + $0x210] sm:$0xff]
    %v80 = vld [vmem:[%s0 + $0x218] sm:$0xff]
    %v81 = vld [vmem:[%s0 + $0x220] sm:$0xff]
    %v82 = vld [vmem:[%s0 + $0x228] sm:$0xff]
    %v83 = vld [vmem:[%s0 + $0x230] sm:$0xff]
    %v84 = vld [vmem:[%s0 + $0x238] sm:$0xff]
    %v85 = vld [vmem:[%s0 + $0x240] sm:$0xff]
    %v86 = vld [vmem:[%s0 + $0x248] sm:$0xff]
    %v87 = vld [vmem:[%s0 + $0x250] sm:$0xff]
    %v88 = vld [vmem:[%s0 + $0x258] sm:$0xff]
    %v89 = vld [vmem:[%s0 + $0x260] sm:$0xff]
    %v90 = vld [vmem:[%s0 + $0x268] sm:$0xff]
    %v91 = vld [vmem:[%s0 + $0x270] sm:$0xff]
    %v92 = vld [vmem:[%s0 + $0x278] sm:$0xff]
    %v93 = vld [vmem:[%s0 + $0x280] sm:$0xff]
    %v94 = vld [vmem:[%s0 + $0x288] sm:$0xff]
    %v95 = vld [vmem:[%s0 + $0x290] sm:$0xff]
    %v96 = vld [vmem:[%s0 + $0x298] sm:$0xff]
    %v97 = vld [vmem:[%s0 + $0x2a0] sm:$0xff]
    %v98 = vld [vmem:[%s0 + $0x2a8] sm:$0xff]
    %v99 = vld [vmem:[%s0 + $0x2b0] sm:$0xff]
    %v100 = vld [vmem:[%s0 + $0x2b8] sm:$0xff]
    %v101 = vld [vmem:[%s0 + $0x2c0] sm:$0xff]
    %v102 = vld [vmem:[%s0 + $0x2c8] sm:$0xff]
    %v103 = vld [vmem:[%s0 + $0x2d0] sm:$0xff]
    %v104 = vld [vmem:[%s0 + $0x2d8] sm:$0xff]
    %v105 = vld [vmem:[%s0 + $0x2e0] sm:$0xff]
    %v106 = vld [vmem:[%s0 + $0x2e8] sm:$0xff]
    %v107 = vld [vmem:[%s0 + $0x2f0] sm:$0xff]
    %v108 = vld [vmem:[%s0 + $0x2f8] sm:$0xff]
    %v109 = vld [vmem:[%s0 + $0x300] sm:$0xff]
    %v110 = vld [vmem:[%s0 + $0x308] sm:$0xff]
    %v111 = vld [vmem:[%s0 + $0x310] sm:$0xff]
    %v112 = vld [vmem:[%s0 + $0x318] sm:$0xff]
    %v113 = vld [vmem:[%s0 + $0x320] sm:$0xff]
    %v114 = vld [vmem:[%s0 + $0x328] sm:$0xff]
    %v115 = vld [vmem:[%s0 + $0x330] sm:$0xff]
    %v116 = vld [vmem:[%s0 + $0x338] sm:$0xff]
    %v117 = vld [vmem:[%s0 + $0x340] sm:$0xff]
    %v118 = vld [vmem:[%s0 + $0x348] sm:$0xff]
    %v119 = vld [vmem:[%s0 + $0x350] sm:$0xff]
    %v120 = vld [vmem:[%s0 + $0x358] sm:$0xff]
    %v121 = vld [vmem:[%s0 + $0x360] sm:$0xff]
    %v122 = vld [vmem:[%s0 + $0x368] sm:$0xff]
    %v123 = vld [vmem:[%s0 + $0x370] sm:$0xff]
    %v124 = vld [vmem:[%s0 + $0x378] sm:$0xff]
    %v125 = vld [vmem:[%s0 + $0x380] sm:$0xff]
    %v126 = vld [vmem:[%s0 + $0x388] sm:$0xff]
    %v127 = vld [vmem:[%s0 + $0x390] sm:$0xff]
    %v128 = vld [vmem:[%s0 + $0x398] sm:$0xff]
    %v129 = vld [vmem:[%s0 + $0x3a0] sm:$0xff]
    %v130 = vld [vmem:[%s0 + $0x3a8] sm:$0xff]
    %v131 = vld [vmem:[%s0 + $0x3b0] sm:$0xff]
    %v132 = vld [vmem:[%s0 + $0x3b8] sm:$0xff]
    %v133 = vld [vmem:[%s0 + $0x3c0] sm:$0xff]
    %v134 = vld [vmem:[%s0 + $0x3c8] sm:$0xff]
    %v135 = vld [vmem:[%s0 + $0x3d0] sm:$0xff]
    %v136 = vld [vmem:[%s0 + $0x3d8] sm:$0xff]
    %v137 = vld [vmem:[%s0 + $0x3e0] sm:$0xff]
    %v138 = vld [vmem:[%s0 + $0x3e8] sm:$0xff]
    %v139 = vld [vmem:[%s0 + $0x3f0] sm:$0xff]
    %v140 = vld [vmem:[%s0 + $0x3f8] sm:$0xff]
    %v141 = vmul.f32 %v13, 0.125
    %v142 = vmul.f32 %v14, 0.125
    %v143 = vmul.f32 %v15, 0.125
    %v144 = vmul.f32 %v16, 0.125
    %v145 = vmul.f32 %v17, 0.125
    %v146 = vmul.f32 %v18, 0.125
    %v147 = vmul.f32 %v19, 0.125
    %v148 = vmul.f32 %v20, 0.125
    %v149 = vmul.f32 %v21, 0.125
    %v150 = vmul.f32 %v22, 0.125
    %v151 = vmul.f32 %v23, 0.125
    %v152 = vmul.f32 %v24, 0.125
    %v153 = vmul.f32 %v25, 0.125
    %v154 = vmul.f32 %v26, 0.125
    %v155 = vmul.f32 %v27, 0.125
    %v156 = vmul.f32 %v28, 0.125
    %v157 = vmul.f32 %v29, 0.125
    %v158 = vmul.f32 %v30, 0.125
    %v159 = vmul.f32 %v31, 0.125
    %v160 = vmul.f32 %v32, 0.125
    %v161 = vmul.f32 %v33, 0.125
    %v162 = vmul.f32 %v34, 0.125
    %v163 = vmul.f32 %v35, 0.125
    %v164 = vmul.f32 %v36, 0.125
    %v165 = vmul.f32 %v37, 0.125
    %v166 = vmul.f32 %v38, 0.125
    %v167 = vmul.f32 %v39, 0.125
    %v168 = vmul.f32 %v40, 0.125
    %v169 = vmul.f32 %v41, 0.125
    %v170 = vmul.f32 %v42, 0.125
    %v171 = vmul.f32 %v43, 0.125
    %v172 = vmul.f32 %v44, 0.125
    %v173 = vmul.f32 %v45, 0.125
    %v174 = vmul.f32 %v46, 0.125
    %v175 = vmul.f32 %v47, 0.125
    %v176 = vmul.f32 %v48, 0.125
    %v177 = vmul.f32 %v49, 0.125
    %v178 = vmul.f32 %v50, 0.125
    %v179 = vmul.f32 %v51, 0.125
    %v180 = vmul.f32 %v52, 0.125
    %v181 = vmul.f32 %v53, 0.125
    %v182 = vmul.f32 %v54, 0.125
    %v183 = vmul.f32 %v55, 0.125
    %v184 = vmul.f32 %v56, 0.125
    %v185 = vmul.f32 %v57, 0.125
    %v186 = vmul.f32 %v58, 0.125
    %v187 = vmul.f32 %v59, 0.125
    %v188 = vmul.f32 %v60, 0.125
    %v189 = vmul.f32 %v61, 0.125
    %v190 = vmul.f32 %v62, 0.125
    %v191 = vmul.f32 %v63, 0.125
    %v192 = vmul.f32 %v64, 0.125
    %v193 = vmul.f32 %v65, 0.125
    %v194 = vmul.f32 %v66, 0.125
    %v195 = vmul.f32 %v67, 0.125
    %v196 = vmul.f32 %v68, 0.125
    %v197 = vmul.f32 %v69, 0.125
    %v198 = vmul.f32 %v70, 0.125
    %v199 = vmul.f32 %v71, 0.125
    %v200 = vmul.f32 %v72, 0.125
    %v201 = vmul.f32 %v73, 0.125
    %v202 = vmul.f32 %v74, 0.125
    %v203 = vmul.f32 %v75, 0.125
    %v204 = vmul.f32 %v76, 0.125
    %v205 = vmul.f32 %v77, 0.125
    %v206 = vmul.f32 %v78, 0.125
    %v207 = vmul.f32 %v79, 0.125
    %v208 = vmul.f32 %v80, 0.125
    %v209 = vmul.f32 %v81, 0.125
    %v210 = vmul.f32 %v82, 0.125
    %v211 = vmul.f32 %v83, 0.125
    %v212 = vmul.f32 %v84, 0.125
    %v213 = vmul.f32 %v85, 0.125
    %v214 = vmul.f32 %v86, 0.125
    %v215 = vmul.f32 %v87, 0.125
    %v216 = vmul.f32 %v88, 0.125
    %v217 = vmul.f32 %v89, 0.125
    %v218 = vmul.f32 %v90, 0.125
    %v219 = vmul.f32 %v91, 0.125
    %v220 = vmul.f32 %v92, 0.125
    %v221 = vmul.f32 %v93, 0.125
    %v222 = vmul.f32 %v94, 0.125
    %v223 = vmul.f32 %v95, 0.125
    %v224 = vmul.f32 %v96, 0.125
    %v225 = vmul.f32 %v97, 0.125
    %v226 = vmul.f32 %v98, 0.125
    %v227 = vmul.f32 %v99, 0.125
    %v228 = vmul.f32 %v100, 0.125
    %v229 = vmul.f32 %v101, 0.125
    %v230 = vmul.f32 %v102, 0.125
    %v231 = vmul.f32 %v103, 0.125
    %v232 = vmul.f32 %v104, 0.125
    %v233 = vmul.f32 %v105, 0.125
    %v234 = vmul.f32 %v106, 0.125
    %v235 = vmul.f32 %v107, 0.125
    %v236 = vmul.f32 %v108, 0.125
    %v237 = vmul.f32 %v109, 0.125
    %v238 = vmul.f32 %v110, 0.125
    %v239 = vmul.f32 %v111, 0.125
    %v240 = vmul.f32 %v112, 0.125
    %v241 = vmul.f32 %v113, 0.125
    %v242 = vmul.f32 %v114, 0.125
    %v243 = vmul.f32 %v115, 0.125
    %v244 = vmul.f32 %v116, 0.125
    %v245 = vmul.f32 %v117, 0.125
    %v246 = vmul.f32 %v118, 0.125
    %v247 = vmul.f32 %v119, 0.125
    %v248 = vmul.f32 %v120, 0.125
    %v249 = vmul.f32 %v121, 0.125
    %v250 = vmul.f32 %v122, 0.125
    %v251 = vmul.f32 %v123, 0.125
    %v252 = vmul.f32 %v124, 0.125
    %v253 = vmul.f32 %v125, 0.125
    %v254 = vmul.f32 %v126, 0.125
    %v255 = vmul.f32 %v127, 0.125
    %v256 = vmul.f32 %v128, 0.125
    %v257 = vmul.f32 %v129, 0.125
    %v258 = vmul.f32 %v130, 0.125
    %v259 = vmul.f32 %v131, 0.125
    %v260 = vmul.f32 %v132, 0.125
    %v261 = vmul.f32 %v133, 0.125
    %v262 = vmul.f32 %v134, 0.125
    %v263 = vmul.f32 %v135, 0.125
    %v264 = vmul.f32 %v136, 0.125
    %v265 = vmul.f32 %v137, 0.125
    %v266 = vmul.f32 %v138, 0.125
    %v267 = vmul.f32 %v139, 0.125
    %v268 = vmul.f32 %v140, 0.125
    %v269 = vpack.c.bf16 %v141, %v141
    %v270 = vpack.c.bf16 %v142, %v142
    %v271 = vpack.c.bf16 %v143, %v143
    %v272 = vpack.c.bf16 %v144, %v144
    %v273 = vpack.c.bf16 %v145, %v145
    %v274 = vpack.c.bf16 %v146, %v146
    %v275 = vpack.c.bf16 %v147, %v147
    %v276 = vpack.c.bf16 %v148, %v148
    %v277 = vpack.c.bf16 %v149, %v149
    %v278 = vpack.c.bf16 %v150, %v150
    %v279 = vpack.c.bf16 %v151, %v151
    %v280 = vpack.c.bf16 %v152, %v152
    %v281 = vpack.c.bf16 %v153, %v153
    %v282 = vpack.c.bf16 %v154, %v154
    %v283 = vpack.c.bf16 %v155, %v155
    %v284 = vpack.c.bf16 %v156, %v156
    %v285 = vpack.c.bf16 %v157, %v157
    %v286 = vpack.c.bf16 %v158, %v158
    %v287 = vpack.c.bf16 %v159, %v159
    %v288 = vpack.c.bf16 %v160, %v160
    %v289 = vpack.c.bf16 %v161, %v161
    %v290 = vpack.c.bf16 %v162, %v162
    %v291 = vpack.c.bf16 %v163, %v163
    %v292 = vpack.c.bf16 %v164, %v164
    %v293 = vpack.c.bf16 %v165, %v165
    %v294 = vpack.c.bf16 %v166, %v166
    %v295 = vpack.c.bf16 %v167, %v167
    %v296 = vpack.c.bf16 %v168, %v168
    %v297 = vpack.c.bf16 %v169, %v169
    %v298 = vpack.c.bf16 %v170, %v170
    %v299 = vpack.c.bf16 %v171, %v171
    %v300 = vpack.c.bf16 %v172, %v172
    %v301 = vpack.c.bf16 %v173, %v173
    %v302 = vpack.c.bf16 %v174, %v174
    %v303 = vpack.c.bf16 %v175, %v175
    %v304 = vpack.c.bf16 %v176, %v176
    %v305 = vpack.c.bf16 %v177, %v177
    %v306 = vpack.c.bf16 %v178, %v178
    %v307 = vpack.c.bf16 %v179, %v179
    %v308 = vpack.c.bf16 %v180, %v180
    %v309 = vpack.c.bf16 %v181, %v181
    %v310 = vpack.c.bf16 %v182, %v182
    %v311 = vpack.c.bf16 %v183, %v183
    %v312 = vpack.c.bf16 %v184, %v184
    %v313 = vpack.c.bf16 %v185, %v185
    %v314 = vpack.c.bf16 %v186, %v186
    %v315 = vpack.c.bf16 %v187, %v187
    %v316 = vpack.c.bf16 %v188, %v188
    %v317 = vpack.c.bf16 %v189, %v189
    %v318 = vpack.c.bf16 %v190, %v190
    %v319 = vpack.c.bf16 %v191, %v191
    %v320 = vpack.c.bf16 %v192, %v192
    %v321 = vpack.c.bf16 %v193, %v193
    %v322 = vpack.c.bf16 %v194, %v194
    %v323 = vpack.c.bf16 %v195, %v195
    %v324 = vpack.c.bf16 %v196, %v196
    %v325 = vpack.c.bf16 %v197, %v197
    %v326 = vpack.c.bf16 %v198, %v198
    %v327 = vpack.c.bf16 %v199, %v199
    %v328 = vpack.c.bf16 %v200, %v200
    %v329 = vpack.c.bf16 %v201, %v201
    %v330 = vpack.c.bf16 %v202, %v202
    %v331 = vpack.c.bf16 %v203, %v203
    %v332 = vpack.c.bf16 %v204, %v204
    %v333 = vpack.c.bf16 %v205, %v205
    %v334 = vpack.c.bf16 %v206, %v206
    %v335 = vpack.c.bf16 %v207, %v207
    %v336 = vpack.c.bf16 %v208, %v208
    %v337 = vpack.c.bf16 %v209, %v209
    %v338 = vpack.c.bf16 %v210, %v210
    %v339 = vpack.c.bf16 %v211, %v211
    %v340 = vpack.c.bf16 %v212, %v212
    %v341 = vpack.c.bf16 %v213, %v213
    %v342 = vpack.c.bf16 %v214, %v214
    %v343 = vpack.c.bf16 %v215, %v215
    %v344 = vpack.c.bf16 %v216, %v216
    %v345 = vpack.c.bf16 %v217, %v217
    %v346 = vpack.c.bf16 %v218, %v218
    %v347 = vpack.c.bf16 %v219, %v219
    %v348 = vpack.c.bf16 %v220, %v220
    %v349 = vpack.c.bf16 %v221, %v221
    %v350 = vpack.c.bf16 %v222, %v222
    %v351 = vpack.c.bf16 %v223, %v223
    %v352 = vpack.c.bf16 %v224, %v224
    %v353 = vpack.c.bf16 %v225, %v225
    %v354 = vpack.c.bf16 %v226, %v226
    %v355 = vpack.c.bf16 %v227, %v227
    %v356 = vpack.c.bf16 %v228, %v228
    %v357 = vpack.c.bf16 %v229, %v229
    %v358 = vpack.c.bf16 %v230, %v230
    %v359 = vpack.c.bf16 %v231, %v231
    %v360 = vpack.c.bf16 %v232, %v232
    %v361 = vpack.c.bf16 %v233, %v233
    %v362 = vpack.c.bf16 %v234, %v234
    %v363 = vpack.c.bf16 %v235, %v235
    %v364 = vpack.c.bf16 %v236, %v236
    %v365 = vpack.c.bf16 %v237, %v237
    %v366 = vpack.c.bf16 %v238, %v238
    %v367 = vpack.c.bf16 %v239, %v239
    %v368 = vpack.c.bf16 %v240, %v240
    %v369 = vpack.c.bf16 %v241, %v241
    %v370 = vpack.c.bf16 %v242, %v242
    %v371 = vpack.c.bf16 %v243, %v243
    %v372 = vpack.c.bf16 %v244, %v244
    %v373 = vpack.c.bf16 %v245, %v245
    %v374 = vpack.c.bf16 %v246, %v246
    %v375 = vpack.c.bf16 %v247, %v247
    %v376 = vpack.c.bf16 %v248, %v248
    %v377 = vpack.c.bf16 %v249, %v249
    %v378 = vpack.c.bf16 %v250, %v250
    %v379 = vpack.c.bf16 %v251, %v251
    %v380 = vpack.c.bf16 %v252, %v252
    %v381 = vpack.c.bf16 %v253, %v253
    %v382 = vpack.c.bf16 %v254, %v254
    %v383 = vpack.c.bf16 %v255, %v255
    %v384 = vpack.c.bf16 %v256, %v256
    %v385 = vpack.c.bf16 %v257, %v257
    %v386 = vpack.c.bf16 %v258, %v258
    %v387 = vpack.c.bf16 %v259, %v259
    %v388 = vpack.c.bf16 %v260, %v260
    %v389 = vpack.c.bf16 %v261, %v261
    %v390 = vpack.c.bf16 %v262, %v262
    %v391 = vpack.c.bf16 %v263, %v263
    %v392 = vpack.c.bf16 %v264, %v264
    %v393 = vpack.c.bf16 %v265, %v265
    %v394 = vpack.c.bf16 %v266, %v266
    %v395 = vpack.c.bf16 %v267, %v267
    %v396 = vpack.c.bf16 %v268, %v268
    %v397 = vld [vmem:[%s1] sm:$0xf]
    %v398 = vld [vmem:[%s1 + $0x4] sm:$0xf]
    %v399 = vld [vmem:[%s1 + $0x8] sm:$0xf]
    %v400 = vld [vmem:[%s1 + $0xc] sm:$0xf]
    %v401 = vld [vmem:[%s1 + $0x10] sm:$0xf]
    %v402 = vld [vmem:[%s1 + $0x14] sm:$0xf]
    %v403 = vld [vmem:[%s1 + $0x18] sm:$0xf]
    %v404 = vld [vmem:[%s1 + $0x1c] sm:$0xf]
    %v405 = vld [vmem:[%s1 + $0x20] sm:$0xf]
    %v406 = vld [vmem:[%s1 + $0x24] sm:$0xf]
    %v407 = vld [vmem:[%s1 + $0x28] sm:$0xf]
    %v408 = vld [vmem:[%s1 + $0x2c] sm:$0xf]
    %v409 = vld [vmem:[%s1 + $0x30] sm:$0xf]
    %v410 = vld [vmem:[%s1 + $0x34] sm:$0xf]
    %v411 = vld [vmem:[%s1 + $0x38] sm:$0xf]
    %v412 = vld [vmem:[%s1 + $0x3c] sm:$0xf]
    %v413 = vld [vmem:[%s1 + $0x40] sm:$0xf]
    %v414 = vld [vmem:[%s1 + $0x44] sm:$0xf]
    %v415 = vld [vmem:[%s1 + $0x48] sm:$0xf]
    %v416 = vld [vmem:[%s1 + $0x4c] sm:$0xf]
    %v417 = vld [vmem:[%s1 + $0x50] sm:$0xf]
    %v418 = vld [vmem:[%s1 + $0x54] sm:$0xf]
    %v419 = vld [vmem:[%s1 + $0x58] sm:$0xf]
    %v420 = vld [vmem:[%s1 + $0x5c] sm:$0xf]
    %v421 = vld [vmem:[%s1 + $0x60] sm:$0xf]
    %v422 = vld [vmem:[%s1 + $0x64] sm:$0xf]
    %v423 = vld [vmem:[%s1 + $0x68] sm:$0xf]
    %v424 = vld [vmem:[%s1 + $0x6c] sm:$0xf]
    %v425 = vld [vmem:[%s1 + $0x70] sm:$0xf]
    %v426 = vld [vmem:[%s1 + $0x74] sm:$0xf]
    %v427 = vld [vmem:[%s1 + $0x78] sm:$0xf]
    %v428 = vld [vmem:[%s1 + $0x7c] sm:$0xf]
    %v429 = vld [vmem:[%s1 + $0x80] sm:$0xf]
    %v430 = vld [vmem:[%s1 + $0x84] sm:$0xf]
    %v431 = vld [vmem:[%s1 + $0x88] sm:$0xf]
    %v432 = vld [vmem:[%s1 + $0x8c] sm:$0xf]
    %v433 = vld [vmem:[%s1 + $0x90] sm:$0xf]
    %v434 = vld [vmem:[%s1 + $0x94] sm:$0xf]
    %v435 = vld [vmem:[%s1 + $0x98] sm:$0xf]
    %v436 = vld [vmem:[%s1 + $0x9c] sm:$0xf]
    %v437 = vld [vmem:[%s1 + $0xa0] sm:$0xf]
    %v438 = vld [vmem:[%s1 + $0xa4] sm:$0xf]
    %v439 = vld [vmem:[%s1 + $0xa8] sm:$0xf]
    %v440 = vld [vmem:[%s1 + $0xac] sm:$0xf]
    %v441 = vld [vmem:[%s1 + $0xb0] sm:$0xf]
    %v442 = vld [vmem:[%s1 + $0xb4] sm:$0xf]
    %v443 = vld [vmem:[%s1 + $0xb8] sm:$0xf]
    %v444 = vld [vmem:[%s1 + $0xbc] sm:$0xf]
    %v445 = vld [vmem:[%s1 + $0xc0] sm:$0xf]
    %v446 = vld [vmem:[%s1 + $0xc4] sm:$0xf]
    %v447 = vld [vmem:[%s1 + $0xc8] sm:$0xf]
    %v448 = vld [vmem:[%s1 + $0xcc] sm:$0xf]
    %v449 = vld [vmem:[%s1 + $0xd0] sm:$0xf]
    %v450 = vld [vmem:[%s1 + $0xd4] sm:$0xf]
    %v451 = vld [vmem:[%s1 + $0xd8] sm:$0xf]
    %v452 = vld [vmem:[%s1 + $0xdc] sm:$0xf]
    %v453 = vld [vmem:[%s1 + $0xe0] sm:$0xf]
    %v454 = vld [vmem:[%s1 + $0xe4] sm:$0xf]
    %v455 = vld [vmem:[%s1 + $0xe8] sm:$0xf]
    %v456 = vld [vmem:[%s1 + $0xec] sm:$0xf]
    %v457 = vld [vmem:[%s1 + $0xf0] sm:$0xf]
    %v458 = vld [vmem:[%s1 + $0xf4] sm:$0xf]
    %v459 = vld [vmem:[%s1 + $0xf8] sm:$0xf]
    %v460 = vld [vmem:[%s1 + $0xfc] sm:$0xf]
    %v477 = vunpack.c.l.b16 %v269
    %v478 = vunpack.c.l.b16 %v270
    %v479 = vunpack.c.l.b16 %v271
    %v480 = vunpack.c.l.b16 %v272
    %v481 = vunpack.c.l.b16 %v273
    %v482 = vunpack.c.l.b16 %v274
    %v483 = vunpack.c.l.b16 %v275
    %v484 = vunpack.c.l.b16 %v276
    %v485 = vunpack.c.l.b16 %v277
    %v486 = vunpack.c.l.b16 %v278
    %v487 = vunpack.c.l.b16 %v279
    %v488 = vunpack.c.l.b16 %v280
    %v489 = vunpack.c.l.b16 %v281
    %v490 = vunpack.c.l.b16 %v282
    %v491 = vunpack.c.l.b16 %v283
    %v492 = vunpack.c.l.b16 %v284
    %v493 = vpack.c.b16 %v478, %v477
    %v494 = vpack.c.b16 %v480, %v479
    %v495 = vpack.c.b16 %v482, %v481
    %v496 = vpack.c.b16 %v484, %v483
    %v497 = vpack.c.b16 %v486, %v485
    %v498 = vpack.c.b16 %v488, %v487
    %v499 = vpack.c.b16 %v490, %v489
    %v500 = vpack.c.b16 %v492, %v491
    %v509 = vunpack.c.l.b16 %v397
    %v510 = vunpack.c.l.b16 %v398
    %v511 = vunpack.c.l.b16 %v399
    %v512 = vunpack.c.l.b16 %v400
    %v513 = vunpack.c.l.b16 %v401
    %v514 = vunpack.c.l.b16 %v402
    %v515 = vunpack.c.l.b16 %v403
    %v516 = vunpack.c.l.b16 %v404
    %v517 = vpack.c.b16 %v510, %v509
    %v518 = vpack.c.b16 %v512, %v511
    %v519 = vpack.c.b16 %v514, %v513
    %v520 = vpack.c.b16 %v516, %v515
    %vm525 = vcmask 523264
    %v527 = vsel %vm525, %v493, 0
    %v530 = vsel %vm525, %v494, 0
    %v533 = vsel %vm525, %v495, 0
    %v536 = vsel %vm525, %v496, 0
    %v539 = vsel %vm525, %v497, 0
    %v542 = vsel %vm525, %v498, 0
    %v545 = vsel %vm525, %v499, 0
    %v548 = vsel %vm525, %v500, 0
    %550 = vmatpush.bf16.msra.mxu0 0
    %551 = vmatpush.bf16.msra.mxu0 0
    %552 = vmatpush.bf16.msra.mxu0 0
    %553 = vmatpush.bf16.msra.mxu0 0
    %554 = vmatpush.bf16.msra.mxu0 %v520
    %555 = vmatpush.bf16.msra.mxu0 %v519
    %556 = vmatpush.bf16.msra.mxu0 %v518
    %557 = vmatpush.bf16.msra.mxu0 %v517
    %558 = vmatmul.bf16.gmra.mxu0 %v527
    %v559 = vpop.f32.mrf.mxu0
    %v560 = vadd.f32 0.0, %v559
    %v561 = vpop.f32.mrf.mxu0
    %v562 = vadd.f32 0.0, %v561
    %563 = vmatmul.bf16.gmra.mxu0 %v530
    %v564 = vpop.f32.mrf.mxu0
    %v565 = vadd.f32 0.0, %v564
    %v566 = vpop.f32.mrf.mxu0
    %v567 = vadd.f32 0.0, %v566
    %568 = vmatmul.bf16.gmra.mxu0 %v533
    %v569 = vpop.f32.mrf.mxu0
    %v570 = vadd.f32 0.0, %v569
    %v571 = vpop.f32.mrf.mxu0
    %v572 = vadd.f32 0.0, %v571
    %573 = vmatmul.bf16.gmra.mxu0 %v536
    %v574 = vpop.f32.mrf.mxu0
    %v575 = vadd.f32 0.0, %v574
    %v576 = vpop.f32.mrf.mxu0
    %v577 = vadd.f32 0.0, %v576
    %578 = vmatmul.bf16.gmra.mxu0 %v539
    %v579 = vpop.f32.mrf.mxu0
    %v580 = vadd.f32 0.0, %v579
    %v581 = vpop.f32.mrf.mxu0
    %v582 = vadd.f32 0.0, %v581
    %583 = vmatmul.bf16.gmra.mxu0 %v542
    %v584 = vpop.f32.mrf.mxu0
    %v585 = vadd.f32 0.0, %v584
    %v586 = vpop.f32.mrf.mxu0
    %v587 = vadd.f32 0.0, %v586
    %588 = vmatmul.bf16.gmra.mxu0 %v545
    %v589 = vpop.f32.mrf.mxu0
    %v590 = vadd.f32 0.0, %v589
    %v591 = vpop.f32.mrf.mxu0
    %v592 = vadd.f32 0.0, %v591
    %593 = vmatmul.bf16.gmra.mxu0 %v548
    %v594 = vpop.f32.mrf.mxu0
    %v595 = vadd.f32 0.0, %v594
    %v596 = vpop.f32.mrf.mxu0
    %v597 = vadd.f32 0.0, %v596
    %598 = vdwg.mxu0
    %v615 = vunpack.c.l.b16 %v285
    %v616 = vunpack.c.l.b16 %v286
    %v617 = vunpack.c.l.b16 %v287
    %v618 = vunpack.c.l.b16 %v288
    %v619 = vunpack.c.l.b16 %v289
    %v620 = vunpack.c.l.b16 %v290
    %v621 = vunpack.c.l.b16 %v291
    %v622 = vunpack.c.l.b16 %v292
    %v623 = vunpack.c.l.b16 %v293
    %v624 = vunpack.c.l.b16 %v294
    %v625 = vunpack.c.l.b16 %v295
    %v626 = vunpack.c.l.b16 %v296
    %v627 = vunpack.c.l.b16 %v297
    %v628 = vunpack.c.l.b16 %v298
    %v629 = vunpack.c.l.b16 %v299
    %v630 = vunpack.c.l.b16 %v300
    %v631 = vpack.c.b16 %v616, %v615
    %v632 = vpack.c.b16 %v618, %v617
    %v633 = vpack.c.b16 %v620, %v619
    %v634 = vpack.c.b16 %v622, %v621
    %v635 = vpack.c.b16 %v624, %v623
    %v636 = vpack.c.b16 %v626, %v625
    %v637 = vpack.c.b16 %v628, %v627
    %v638 = vpack.c.b16 %v630, %v629
    %v647 = vunpack.c.l.b16 %v405
    %v648 = vunpack.c.l.b16 %v406
    %v649 = vunpack.c.l.b16 %v407
    %v650 = vunpack.c.l.b16 %v408
    %v651 = vunpack.c.l.b16 %v409
    %v652 = vunpack.c.l.b16 %v410
    %v653 = vunpack.c.l.b16 %v411
    %v654 = vunpack.c.l.b16 %v412
    %v655 = vpack.c.b16 %v648, %v647
    %v656 = vpack.c.b16 %v650, %v649
    %v657 = vpack.c.b16 %v652, %v651
    %v658 = vpack.c.b16 %v654, %v653
    %v664 = vsel %vm525, %v631, 0
    %v667 = vsel %vm525, %v632, 0
    %v670 = vsel %vm525, %v633, 0
    %v673 = vsel %vm525, %v634, 0
    %v676 = vsel %vm525, %v635, 0
    %v679 = vsel %vm525, %v636, 0
    %v682 = vsel %vm525, %v637, 0
    %v685 = vsel %vm525, %v638, 0
    %687 = vmatpush.bf16.msra.mxu0 0
    %688 = vmatpush.bf16.msra.mxu0 0
    %689 = vmatpush.bf16.msra.mxu0 0
    %690 = vmatpush.bf16.msra.mxu0 0
    %691 = vmatpush.bf16.msra.mxu0 %v658
    %692 = vmatpush.bf16.msra.mxu0 %v657
    %693 = vmatpush.bf16.msra.mxu0 %v656
    %694 = vmatpush.bf16.msra.mxu0 %v655
    %695 = vmatmul.bf16.gmra.mxu0 %v664
    %v696 = vpop.f32.mrf.mxu0
    %v697 = vadd.f32 0.0, %v696
    %v698 = vpop.f32.mrf.mxu0
    %v699 = vadd.f32 0.0, %v698
    %700 = vmatmul.bf16.gmra.mxu0 %v667
    %v701 = vpop.f32.mrf.mxu0
    %v702 = vadd.f32 0.0, %v701
    %v703 = vpop.f32.mrf.mxu0
    %v704 = vadd.f32 0.0, %v703
    %705 = vmatmul.bf16.gmra.mxu0 %v670
    %v706 = vpop.f32.mrf.mxu0
    %v707 = vadd.f32 0.0, %v706
    %v708 = vpop.f32.mrf.mxu0
    %v709 = vadd.f32 0.0, %v708
    %710 = vmatmul.bf16.gmra.mxu0 %v673
    %v711 = vpop.f32.mrf.mxu0
    %v712 = vadd.f32 0.0, %v711
    %v713 = vpop.f32.mrf.mxu0
    %v714 = vadd.f32 0.0, %v713
    %715 = vmatmul.bf16.gmra.mxu0 %v676
    %v716 = vpop.f32.mrf.mxu0
    %v717 = vadd.f32 0.0, %v716
    %v718 = vpop.f32.mrf.mxu0
    %v719 = vadd.f32 0.0, %v718
    %720 = vmatmul.bf16.gmra.mxu0 %v679
    %v721 = vpop.f32.mrf.mxu0
    %v722 = vadd.f32 0.0, %v721
    %v723 = vpop.f32.mrf.mxu0
    %v724 = vadd.f32 0.0, %v723
    %725 = vmatmul.bf16.gmra.mxu0 %v682
    %v726 = vpop.f32.mrf.mxu0
    %v727 = vadd.f32 0.0, %v726
    %v728 = vpop.f32.mrf.mxu0
    %v729 = vadd.f32 0.0, %v728
    %730 = vmatmul.bf16.gmra.mxu0 %v685
    %v731 = vpop.f32.mrf.mxu0
    %v732 = vadd.f32 0.0, %v731
    %v733 = vpop.f32.mrf.mxu0
    %v734 = vadd.f32 0.0, %v733
    %735 = vdwg.mxu0
    %v752 = vunpack.c.l.b16 %v301
    %v753 = vunpack.c.l.b16 %v302
    %v754 = vunpack.c.l.b16 %v303
    %v755 = vunpack.c.l.b16 %v304
    %v756 = vunpack.c.l.b16 %v305
    %v757 = vunpack.c.l.b16 %v306
    %v758 = vunpack.c.l.b16 %v307
    %v759 = vunpack.c.l.b16 %v308
    %v760 = vunpack.c.l.b16 %v309
    %v761 = vunpack.c.l.b16 %v310
    %v762 = vunpack.c.l.b16 %v311
    %v763 = vunpack.c.l.b16 %v312
    %v764 = vunpack.c.l.b16 %v313
    %v765 = vunpack.c.l.b16 %v314
    %v766 = vunpack.c.l.b16 %v315
    %v767 = vunpack.c.l.b16 %v316
    %v768 = vpack.c.b16 %v753, %v752
    %v769 = vpack.c.b16 %v755, %v754
    %v770 = vpack.c.b16 %v757, %v756
    %v771 = vpack.c.b16 %v759, %v758
    %v772 = vpack.c.b16 %v761, %v760
    %v773 = vpack.c.b16 %v763, %v762
    %v774 = vpack.c.b16 %v765, %v764
    %v775 = vpack.c.b16 %v767, %v766
    %v784 = vunpack.c.l.b16 %v413
    %v785 = vunpack.c.l.b16 %v414
    %v786 = vunpack.c.l.b16 %v415
    %v787 = vunpack.c.l.b16 %v416
    %v788 = vunpack.c.l.b16 %v417
    %v789 = vunpack.c.l.b16 %v418
    %v790 = vunpack.c.l.b16 %v419
    %v791 = vunpack.c.l.b16 %v420
    %v792 = vpack.c.b16 %v785, %v784
    %v793 = vpack.c.b16 %v787, %v786
    %v794 = vpack.c.b16 %v789, %v788
    %v795 = vpack.c.b16 %v791, %v790
    %v801 = vsel %vm525, %v768, 0
    %v804 = vsel %vm525, %v769, 0
    %v807 = vsel %vm525, %v770, 0
    %v810 = vsel %vm525, %v771, 0
    %v813 = vsel %vm525, %v772, 0
    %v816 = vsel %vm525, %v773, 0
    %v819 = vsel %vm525, %v774, 0
    %v822 = vsel %vm525, %v775, 0
    %824 = vmatpush.bf16.msra.mxu0 0
    %825 = vmatpush.bf16.msra.mxu0 0
    %826 = vmatpush.bf16.msra.mxu0 0
    %827 = vmatpush.bf16.msra.mxu0 0
    %828 = vmatpush.bf16.msra.mxu0 %v795
    %829 = vmatpush.bf16.msra.mxu0 %v794
    %830 = vmatpush.bf16.msra.mxu0 %v793
    %831 = vmatpush.bf16.msra.mxu0 %v792
    %832 = vmatmul.bf16.gmra.mxu0 %v801
    %v833 = vpop.f32.mrf.mxu0
    %v834 = vadd.f32 0.0, %v833
    %v835 = vpop.f32.mrf.mxu0
    %v836 = vadd.f32 0.0, %v835
    %837 = vmatmul.bf16.gmra.mxu0 %v804
    %v838 = vpop.f32.mrf.mxu0
    %v839 = vadd.f32 0.0, %v838
    %v840 = vpop.f32.mrf.mxu0
    %v841 = vadd.f32 0.0, %v840
    %842 = vmatmul.bf16.gmra.mxu0 %v807
    %v843 = vpop.f32.mrf.mxu0
    %v844 = vadd.f32 0.0, %v843
    %v845 = vpop.f32.mrf.mxu0
    %v846 = vadd.f32 0.0, %v845
    %847 = vmatmul.bf16.gmra.mxu0 %v810
    %v848 = vpop.f32.mrf.mxu0
    %v849 = vadd.f32 0.0, %v848
    %v850 = vpop.f32.mrf.mxu0
    %v851 = vadd.f32 0.0, %v850
    %852 = vmatmul.bf16.gmra.mxu0 %v813
    %v853 = vpop.f32.mrf.mxu0
    %v854 = vadd.f32 0.0, %v853
    %v855 = vpop.f32.mrf.mxu0
    %v856 = vadd.f32 0.0, %v855
    %857 = vmatmul.bf16.gmra.mxu0 %v816
    %v858 = vpop.f32.mrf.mxu0
    %v859 = vadd.f32 0.0, %v858
    %v860 = vpop.f32.mrf.mxu0
    %v861 = vadd.f32 0.0, %v860
    %862 = vmatmul.bf16.gmra.mxu0 %v819
    %v863 = vpop.f32.mrf.mxu0
    %v864 = vadd.f32 0.0, %v863
    %v865 = vpop.f32.mrf.mxu0
    %v866 = vadd.f32 0.0, %v865
    %867 = vmatmul.bf16.gmra.mxu0 %v822
    %v868 = vpop.f32.mrf.mxu0
    %v869 = vadd.f32 0.0, %v868
    %v870 = vpop.f32.mrf.mxu0
    %v871 = vadd.f32 0.0, %v870
    %872 = vdwg.mxu0
    %v889 = vunpack.c.l.b16 %v317
    %v890 = vunpack.c.l.b16 %v318
    %v891 = vunpack.c.l.b16 %v319
    %v892 = vunpack.c.l.b16 %v320
    %v893 = vunpack.c.l.b16 %v321
    %v894 = vunpack.c.l.b16 %v322
    %v895 = vunpack.c.l.b16 %v323
    %v896 = vunpack.c.l.b16 %v324
    %v897 = vunpack.c.l.b16 %v325
    %v898 = vunpack.c.l.b16 %v326
    %v899 = vunpack.c.l.b16 %v327
    %v900 = vunpack.c.l.b16 %v328
    %v901 = vunpack.c.l.b16 %v329
    %v902 = vunpack.c.l.b16 %v330
    %v903 = vunpack.c.l.b16 %v331
    %v904 = vunpack.c.l.b16 %v332
    %v905 = vpack.c.b16 %v890, %v889
    %v906 = vpack.c.b16 %v892, %v891
    %v907 = vpack.c.b16 %v894, %v893
    %v908 = vpack.c.b16 %v896, %v895
    %v909 = vpack.c.b16 %v898, %v897
    %v910 = vpack.c.b16 %v900, %v899
    %v911 = vpack.c.b16 %v902, %v901
    %v912 = vpack.c.b16 %v904, %v903
    %v921 = vunpack.c.l.b16 %v421
    %v922 = vunpack.c.l.b16 %v422
    %v923 = vunpack.c.l.b16 %v423
    %v924 = vunpack.c.l.b16 %v424
    %v925 = vunpack.c.l.b16 %v425
    %v926 = vunpack.c.l.b16 %v426
    %v927 = vunpack.c.l.b16 %v427
    %v928 = vunpack.c.l.b16 %v428
    %v929 = vpack.c.b16 %v922, %v921
    %v930 = vpack.c.b16 %v924, %v923
    %v931 = vpack.c.b16 %v926, %v925
    %v932 = vpack.c.b16 %v928, %v927
    %v938 = vsel %vm525, %v905, 0
    %v941 = vsel %vm525, %v906, 0
    %v944 = vsel %vm525, %v907, 0
    %v947 = vsel %vm525, %v908, 0
    %v950 = vsel %vm525, %v909, 0
    %v953 = vsel %vm525, %v910, 0
    %v956 = vsel %vm525, %v911, 0
    %v959 = vsel %vm525, %v912, 0
    %961 = vmatpush.bf16.msra.mxu0 0
    %962 = vmatpush.bf16.msra.mxu0 0
    %963 = vmatpush.bf16.msra.mxu0 0
    %964 = vmatpush.bf16.msra.mxu0 0
    %965 = vmatpush.bf16.msra.mxu0 %v932
    %966 = vmatpush.bf16.msra.mxu0 %v931
    %967 = vmatpush.bf16.msra.mxu0 %v930
    %968 = vmatpush.bf16.msra.mxu0 %v929
    %969 = vmatmul.bf16.gmra.mxu0 %v938
    %v970 = vpop.f32.mrf.mxu0
    %v971 = vadd.f32 0.0, %v970
    %v972 = vpop.f32.mrf.mxu0
    %v973 = vadd.f32 0.0, %v972
    %974 = vmatmul.bf16.gmra.mxu0 %v941
    %v975 = vpop.f32.mrf.mxu0
    %v976 = vadd.f32 0.0, %v975
    %v977 = vpop.f32.mrf.mxu0
    %v978 = vadd.f32 0.0, %v977
    %979 = vmatmul.bf16.gmra.mxu0 %v944
    %v980 = vpop.f32.mrf.mxu0
    %v981 = vadd.f32 0.0, %v980
    %v982 = vpop.f32.mrf.mxu0
    %v983 = vadd.f32 0.0, %v982
    %984 = vmatmul.bf16.gmra.mxu0 %v947
    %v985 = vpop.f32.mrf.mxu0
    %v986 = vadd.f32 0.0, %v985
    %v987 = vpop.f32.mrf.mxu0
    %v988 = vadd.f32 0.0, %v987
    %989 = vmatmul.bf16.gmra.mxu0 %v950
    %v990 = vpop.f32.mrf.mxu0
    %v991 = vadd.f32 0.0, %v990
    %v992 = vpop.f32.mrf.mxu0
    %v993 = vadd.f32 0.0, %v992
    %994 = vmatmul.bf16.gmra.mxu0 %v953
    %v995 = vpop.f32.mrf.mxu0
    %v996 = vadd.f32 0.0, %v995
    %v997 = vpop.f32.mrf.mxu0
    %v998 = vadd.f32 0.0, %v997
    %999 = vmatmul.bf16.gmra.mxu0 %v956
    %v1000 = vpop.f32.mrf.mxu0
    %v1001 = vadd.f32 0.0, %v1000
    %v1002 = vpop.f32.mrf.mxu0
    %v1003 = vadd.f32 0.0, %v1002
    %1004 = vmatmul.bf16.gmra.mxu0 %v959
    %v1005 = vpop.f32.mrf.mxu0
    %v1006 = vadd.f32 0.0, %v1005
    %v1007 = vpop.f32.mrf.mxu0
    %v1008 = vadd.f32 0.0, %v1007
    %1009 = vdwg.mxu0
    %v1026 = vunpack.c.l.b16 %v333
    %v1027 = vunpack.c.l.b16 %v334
    %v1028 = vunpack.c.l.b16 %v335
    %v1029 = vunpack.c.l.b16 %v336
    %v1030 = vunpack.c.l.b16 %v337
    %v1031 = vunpack.c.l.b16 %v338
    %v1032 = vunpack.c.l.b16 %v339
    %v1033 = vunpack.c.l.b16 %v340
    %v1034 = vunpack.c.l.b16 %v341
    %v1035 = vunpack.c.l.b16 %v342
    %v1036 = vunpack.c.l.b16 %v343
    %v1037 = vunpack.c.l.b16 %v344
    %v1038 = vunpack.c.l.b16 %v345
    %v1039 = vunpack.c.l.b16 %v346
    %v1040 = vunpack.c.l.b16 %v347
    %v1041 = vunpack.c.l.b16 %v348
    %v1042 = vpack.c.b16 %v1027, %v1026
    %v1043 = vpack.c.b16 %v1029, %v1028
    %v1044 = vpack.c.b16 %v1031, %v1030
    %v1045 = vpack.c.b16 %v1033, %v1032
    %v1046 = vpack.c.b16 %v1035, %v1034
    %v1047 = vpack.c.b16 %v1037, %v1036
    %v1048 = vpack.c.b16 %v1039, %v1038
    %v1049 = vpack.c.b16 %v1041, %v1040
    %v1058 = vunpack.c.l.b16 %v429
    %v1059 = vunpack.c.l.b16 %v430
    %v1060 = vunpack.c.l.b16 %v431
    %v1061 = vunpack.c.l.b16 %v432
    %v1062 = vunpack.c.l.b16 %v433
    %v1063 = vunpack.c.l.b16 %v434
    %v1064 = vunpack.c.l.b16 %v435
    %v1065 = vunpack.c.l.b16 %v436
    %v1066 = vpack.c.b16 %v1059, %v1058
    %v1067 = vpack.c.b16 %v1061, %v1060
    %v1068 = vpack.c.b16 %v1063, %v1062
    %v1069 = vpack.c.b16 %v1065, %v1064
    %v1075 = vsel %vm525, %v1042, 0
    %v1078 = vsel %vm525, %v1043, 0
    %v1081 = vsel %vm525, %v1044, 0
    %v1084 = vsel %vm525, %v1045, 0
    %v1087 = vsel %vm525, %v1046, 0
    %v1090 = vsel %vm525, %v1047, 0
    %v1093 = vsel %vm525, %v1048, 0
    %v1096 = vsel %vm525, %v1049, 0
    %1098 = vmatpush.bf16.msra.mxu0 0
    %1099 = vmatpush.bf16.msra.mxu0 0
    %1100 = vmatpush.bf16.msra.mxu0 0
    %1101 = vmatpush.bf16.msra.mxu0 0
    %1102 = vmatpush.bf16.msra.mxu0 %v1069
    %1103 = vmatpush.bf16.msra.mxu0 %v1068
    %1104 = vmatpush.bf16.msra.mxu0 %v1067
    %1105 = vmatpush.bf16.msra.mxu0 %v1066
    %1106 = vmatmul.bf16.gmra.mxu0 %v1075
    %v1107 = vpop.f32.mrf.mxu0
    %v1108 = vadd.f32 0.0, %v1107
    %v1109 = vpop.f32.mrf.mxu0
    %v1110 = vadd.f32 0.0, %v1109
    %1111 = vmatmul.bf16.gmra.mxu0 %v1078
    %v1112 = vpop.f32.mrf.mxu0
    %v1113 = vadd.f32 0.0, %v1112
    %v1114 = vpop.f32.mrf.mxu0
    %v1115 = vadd.f32 0.0, %v1114
    %1116 = vmatmul.bf16.gmra.mxu0 %v1081
    %v1117 = vpop.f32.mrf.mxu0
    %v1118 = vadd.f32 0.0, %v1117
    %v1119 = vpop.f32.mrf.mxu0
    %v1120 = vadd.f32 0.0, %v1119
    %1121 = vmatmul.bf16.gmra.mxu0 %v1084
    %v1122 = vpop.f32.mrf.mxu0
    %v1123 = vadd.f32 0.0, %v1122
    %v1124 = vpop.f32.mrf.mxu0
    %v1125 = vadd.f32 0.0, %v1124
    %1126 = vmatmul.bf16.gmra.mxu0 %v1087
    %v1127 = vpop.f32.mrf.mxu0
    %v1128 = vadd.f32 0.0, %v1127
    %v1129 = vpop.f32.mrf.mxu0
    %v1130 = vadd.f32 0.0, %v1129
    %1131 = vmatmul.bf16.gmra.mxu0 %v1090
    %v1132 = vpop.f32.mrf.mxu0
    %v1133 = vadd.f32 0.0, %v1132
    %v1134 = vpop.f32.mrf.mxu0
    %v1135 = vadd.f32 0.0, %v1134
    %1136 = vmatmul.bf16.gmra.mxu0 %v1093
    %v1137 = vpop.f32.mrf.mxu0
    %v1138 = vadd.f32 0.0, %v1137
    %v1139 = vpop.f32.mrf.mxu0
    %v1140 = vadd.f32 0.0, %v1139
    %1141 = vmatmul.bf16.gmra.mxu0 %v1096
    %v1142 = vpop.f32.mrf.mxu0
    %v1143 = vadd.f32 0.0, %v1142
    %v1144 = vpop.f32.mrf.mxu0
    %v1145 = vadd.f32 0.0, %v1144
    %1146 = vdwg.mxu0
    %v1163 = vunpack.c.l.b16 %v349
    %v1164 = vunpack.c.l.b16 %v350
    %v1165 = vunpack.c.l.b16 %v351
    %v1166 = vunpack.c.l.b16 %v352
    %v1167 = vunpack.c.l.b16 %v353
    %v1168 = vunpack.c.l.b16 %v354
    %v1169 = vunpack.c.l.b16 %v355
    %v1170 = vunpack.c.l.b16 %v356
    %v1171 = vunpack.c.l.b16 %v357
    %v1172 = vunpack.c.l.b16 %v358
    %v1173 = vunpack.c.l.b16 %v359
    %v1174 = vunpack.c.l.b16 %v360
    %v1175 = vunpack.c.l.b16 %v361
    %v1176 = vunpack.c.l.b16 %v362
    %v1177 = vunpack.c.l.b16 %v363
    %v1178 = vunpack.c.l.b16 %v364
    %v1179 = vpack.c.b16 %v1164, %v1163
    %v1180 = vpack.c.b16 %v1166, %v1165
    %v1181 = vpack.c.b16 %v1168, %v1167
    %v1182 = vpack.c.b16 %v1170, %v1169
    %v1183 = vpack.c.b16 %v1172, %v1171
    %v1184 = vpack.c.b16 %v1174, %v1173
    %v1185 = vpack.c.b16 %v1176, %v1175
    %v1186 = vpack.c.b16 %v1178, %v1177
    %v1195 = vunpack.c.l.b16 %v437
    %v1196 = vunpack.c.l.b16 %v438
    %v1197 = vunpack.c.l.b16 %v439
    %v1198 = vunpack.c.l.b16 %v440
    %v1199 = vunpack.c.l.b16 %v441
    %v1200 = vunpack.c.l.b16 %v442
    %v1201 = vunpack.c.l.b16 %v443
    %v1202 = vunpack.c.l.b16 %v444
    %v1203 = vpack.c.b16 %v1196, %v1195
    %v1204 = vpack.c.b16 %v1198, %v1197
    %v1205 = vpack.c.b16 %v1200, %v1199
    %v1206 = vpack.c.b16 %v1202, %v1201
    %v1212 = vsel %vm525, %v1179, 0
    %v1215 = vsel %vm525, %v1180, 0
    %v1218 = vsel %vm525, %v1181, 0
    %v1221 = vsel %vm525, %v1182, 0
    %v1224 = vsel %vm525, %v1183, 0
    %v1227 = vsel %vm525, %v1184, 0
    %v1230 = vsel %vm525, %v1185, 0
    %v1233 = vsel %vm525, %v1186, 0
    %1235 = vmatpush.bf16.msra.mxu0 0
    %1236 = vmatpush.bf16.msra.mxu0 0
    %1237 = vmatpush.bf16.msra.mxu0 0
    %1238 = vmatpush.bf16.msra.mxu0 0
    %1239 = vmatpush.bf16.msra.mxu0 %v1206
    %1240 = vmatpush.bf16.msra.mxu0 %v1205
    %1241 = vmatpush.bf16.msra.mxu0 %v1204
    %1242 = vmatpush.bf16.msra.mxu0 %v1203
    %1243 = vmatmul.bf16.gmra.mxu0 %v1212
    %v1244 = vpop.f32.mrf.mxu0
    %v1245 = vadd.f32 0.0, %v1244
    %v1246 = vpop.f32.mrf.mxu0
    %v1247 = vadd.f32 0.0, %v1246
    %1248 = vmatmul.bf16.gmra.mxu0 %v1215
    %v1249 = vpop.f32.mrf.mxu0
    %v1250 = vadd.f32 0.0, %v1249
    %v1251 = vpop.f32.mrf.mxu0
    %v1252 = vadd.f32 0.0, %v1251
    %1253 = vmatmul.bf16.gmra.mxu0 %v1218
    %v1254 = vpop.f32.mrf.mxu0
    %v1255 = vadd.f32 0.0, %v1254
    %v1256 = vpop.f32.mrf.mxu0
    %v1257 = vadd.f32 0.0, %v1256
    %1258 = vmatmul.bf16.gmra.mxu0 %v1221
    %v1259 = vpop.f32.mrf.mxu0
    %v1260 = vadd.f32 0.0, %v1259
    %v1261 = vpop.f32.mrf.mxu0
    %v1262 = vadd.f32 0.0, %v1261
    %1263 = vmatmul.bf16.gmra.mxu0 %v1224
    %v1264 = vpop.f32.mrf.mxu0
    %v1265 = vadd.f32 0.0, %v1264
    %v1266 = vpop.f32.mrf.mxu0
    %v1267 = vadd.f32 0.0, %v1266
    %1268 = vmatmul.bf16.gmra.mxu0 %v1227
    %v1269 = vpop.f32.mrf.mxu0
    %v1270 = vadd.f32 0.0, %v1269
    %v1271 = vpop.f32.mrf.mxu0
    %v1272 = vadd.f32 0.0, %v1271
    %1273 = vmatmul.bf16.gmra.mxu0 %v1230
    %v1274 = vpop.f32.mrf.mxu0
    %v1275 = vadd.f32 0.0, %v1274
    %v1276 = vpop.f32.mrf.mxu0
    %v1277 = vadd.f32 0.0, %v1276
    %1278 = vmatmul.bf16.gmra.mxu0 %v1233
    %v1279 = vpop.f32.mrf.mxu0
    %v1280 = vadd.f32 0.0, %v1279
    %v1281 = vpop.f32.mrf.mxu0
    %v1282 = vadd.f32 0.0, %v1281
    %1283 = vdwg.mxu0
    %v1300 = vunpack.c.l.b16 %v365
    %v1301 = vunpack.c.l.b16 %v366
    %v1302 = vunpack.c.l.b16 %v367
    %v1303 = vunpack.c.l.b16 %v368
    %v1304 = vunpack.c.l.b16 %v369
    %v1305 = vunpack.c.l.b16 %v370
    %v1306 = vunpack.c.l.b16 %v371
    %v1307 = vunpack.c.l.b16 %v372
    %v1308 = vunpack.c.l.b16 %v373
    %v1309 = vunpack.c.l.b16 %v374
    %v1310 = vunpack.c.l.b16 %v375
    %v1311 = vunpack.c.l.b16 %v376
    %v1312 = vunpack.c.l.b16 %v377
    %v1313 = vunpack.c.l.b16 %v378
    %v1314 = vunpack.c.l.b16 %v379
    %v1315 = vunpack.c.l.b16 %v380
    %v1316 = vpack.c.b16 %v1301, %v1300
    %v1317 = vpack.c.b16 %v1303, %v1302
    %v1318 = vpack.c.b16 %v1305, %v1304
    %v1319 = vpack.c.b16 %v1307, %v1306
    %v1320 = vpack.c.b16 %v1309, %v1308
    %v1321 = vpack.c.b16 %v1311, %v1310
    %v1322 = vpack.c.b16 %v1313, %v1312
    %v1323 = vpack.c.b16 %v1315, %v1314
    %v1332 = vunpack.c.l.b16 %v445
    %v1333 = vunpack.c.l.b16 %v446
    %v1334 = vunpack.c.l.b16 %v447
    %v1335 = vunpack.c.l.b16 %v448
    %v1336 = vunpack.c.l.b16 %v449
    %v1337 = vunpack.c.l.b16 %v450
    %v1338 = vunpack.c.l.b16 %v451
    %v1339 = vunpack.c.l.b16 %v452
    %v1340 = vpack.c.b16 %v1333, %v1332
    %v1341 = vpack.c.b16 %v1335, %v1334
    %v1342 = vpack.c.b16 %v1337, %v1336
    %v1343 = vpack.c.b16 %v1339, %v1338
    %v1349 = vsel %vm525, %v1316, 0
    %v1352 = vsel %vm525, %v1317, 0
    %v1355 = vsel %vm525, %v1318, 0
    %v1358 = vsel %vm525, %v1319, 0
    %v1361 = vsel %vm525, %v1320, 0
    %v1364 = vsel %vm525, %v1321, 0
    %v1367 = vsel %vm525, %v1322, 0
    %v1370 = vsel %vm525, %v1323, 0
    %1372 = vmatpush.bf16.msra.mxu0 0
    %1373 = vmatpush.bf16.msra.mxu0 0
    %1374 = vmatpush.bf16.msra.mxu0 0
    %1375 = vmatpush.bf16.msra.mxu0 0
    %1376 = vmatpush.bf16.msra.mxu0 %v1343
    %1377 = vmatpush.bf16.msra.mxu0 %v1342
    %1378 = vmatpush.bf16.msra.mxu0 %v1341
    %1379 = vmatpush.bf16.msra.mxu0 %v1340
    %1380 = vmatmul.bf16.gmra.mxu0 %v1349
    %v1381 = vpop.f32.mrf.mxu0
    %v1382 = vadd.f32 0.0, %v1381
    %v1383 = vpop.f32.mrf.mxu0
    %v1384 = vadd.f32 0.0, %v1383
    %1385 = vmatmul.bf16.gmra.mxu0 %v1352
    %v1386 = vpop.f32.mrf.mxu0
    %v1387 = vadd.f32 0.0, %v1386
    %v1388 = vpop.f32.mrf.mxu0
    %v1389 = vadd.f32 0.0, %v1388
    %1390 = vmatmul.bf16.gmra.mxu0 %v1355
    %v1391 = vpop.f32.mrf.mxu0
    %v1392 = vadd.f32 0.0, %v1391
    %v1393 = vpop.f32.mrf.mxu0
    %v1394 = vadd.f32 0.0, %v1393
    %1395 = vmatmul.bf16.gmra.mxu0 %v1358
    %v1396 = vpop.f32.mrf.mxu0
    %v1397 = vadd.f32 0.0, %v1396
    %v1398 = vpop.f32.mrf.mxu0
    %v1399 = vadd.f32 0.0, %v1398
    %1400 = vmatmul.bf16.gmra.mxu0 %v1361
    %v1401 = vpop.f32.mrf.mxu0
    %v1402 = vadd.f32 0.0, %v1401
    %v1403 = vpop.f32.mrf.mxu0
    %v1404 = vadd.f32 0.0, %v1403
    %1405 = vmatmul.bf16.gmra.mxu0 %v1364
    %v1406 = vpop.f32.mrf.mxu0
    %v1407 = vadd.f32 0.0, %v1406
    %v1408 = vpop.f32.mrf.mxu0
    %v1409 = vadd.f32 0.0, %v1408
    %1410 = vmatmul.bf16.gmra.mxu0 %v1367
    %v1411 = vpop.f32.mrf.mxu0
    %v1412 = vadd.f32 0.0, %v1411
    %v1413 = vpop.f32.mrf.mxu0
    %v1414 = vadd.f32 0.0, %v1413
    %1415 = vmatmul.bf16.gmra.mxu0 %v1370
    %v1416 = vpop.f32.mrf.mxu0
    %v1417 = vadd.f32 0.0, %v1416
    %v1418 = vpop.f32.mrf.mxu0
    %v1419 = vadd.f32 0.0, %v1418
    %1420 = vdwg.mxu0
    %v1437 = vunpack.c.l.b16 %v381
    %v1438 = vunpack.c.l.b16 %v382
    %v1439 = vunpack.c.l.b16 %v383
    %v1440 = vunpack.c.l.b16 %v384
    %v1441 = vunpack.c.l.b16 %v385
    %v1442 = vunpack.c.l.b16 %v386
    %v1443 = vunpack.c.l.b16 %v387
    %v1444 = vunpack.c.l.b16 %v388
    %v1445 = vunpack.c.l.b16 %v389
    %v1446 = vunpack.c.l.b16 %v390
    %v1447 = vunpack.c.l.b16 %v391
    %v1448 = vunpack.c.l.b16 %v392
    %v1449 = vunpack.c.l.b16 %v393
    %v1450 = vunpack.c.l.b16 %v394
    %v1451 = vunpack.c.l.b16 %v395
    %v1452 = vunpack.c.l.b16 %v396
    %v1453 = vpack.c.b16 %v1438, %v1437
    %v1454 = vpack.c.b16 %v1440, %v1439
    %v1455 = vpack.c.b16 %v1442, %v1441
    %v1456 = vpack.c.b16 %v1444, %v1443
    %v1457 = vpack.c.b16 %v1446, %v1445
    %v1458 = vpack.c.b16 %v1448, %v1447
    %v1459 = vpack.c.b16 %v1450, %v1449
    %v1460 = vpack.c.b16 %v1452, %v1451
    %v1469 = vunpack.c.l.b16 %v453
    %v1470 = vunpack.c.l.b16 %v454
    %v1471 = vunpack.c.l.b16 %v455
    %v1472 = vunpack.c.l.b16 %v456
    %v1473 = vunpack.c.l.b16 %v457
    %v1474 = vunpack.c.l.b16 %v458
    %v1475 = vunpack.c.l.b16 %v459
    %v1476 = vunpack.c.l.b16 %v460
    %v1477 = vpack.c.b16 %v1470, %v1469
    %v1478 = vpack.c.b16 %v1472, %v1471
    %v1479 = vpack.c.b16 %v1474, %v1473
    %v1480 = vpack.c.b16 %v1476, %v1475
    %v1486 = vsel %vm525, %v1453, 0
    %v1489 = vsel %vm525, %v1454, 0
    %v1492 = vsel %vm525, %v1455, 0
    %v1495 = vsel %vm525, %v1456, 0
    %v1498 = vsel %vm525, %v1457, 0
    %v1501 = vsel %vm525, %v1458, 0
    %v1504 = vsel %vm525, %v1459, 0
    %v1507 = vsel %vm525, %v1460, 0
    %1509 = vmatpush.bf16.msra.mxu0 0
    %1510 = vmatpush.bf16.msra.mxu0 0
    %1511 = vmatpush.bf16.msra.mxu0 0
    %1512 = vmatpush.bf16.msra.mxu0 0
    %1513 = vmatpush.bf16.msra.mxu0 %v1480
    %1514 = vmatpush.bf16.msra.mxu0 %v1479
    %1515 = vmatpush.bf16.msra.mxu0 %v1478
    %1516 = vmatpush.bf16.msra.mxu0 %v1477
    %1517 = vmatmul.bf16.gmra.mxu0 %v1486
    %v1518 = vpop.f32.mrf.mxu0
    %v1519 = vadd.f32 0.0, %v1518
    %v1520 = vpop.f32.mrf.mxu0
    %v1521 = vadd.f32 0.0, %v1520
    %1522 = vmatmul.bf16.gmra.mxu0 %v1489
    %v1523 = vpop.f32.mrf.mxu0
    %v1524 = vadd.f32 0.0, %v1523
    %v1525 = vpop.f32.mrf.mxu0
    %v1526 = vadd.f32 0.0, %v1525
    %1527 = vmatmul.bf16.gmra.mxu0 %v1492
    %v1528 = vpop.f32.mrf.mxu0
    %v1529 = vadd.f32 0.0, %v1528
    %v1530 = vpop.f32.mrf.mxu0
    %v1531 = vadd.f32 0.0, %v1530
    %1532 = vmatmul.bf16.gmra.mxu0 %v1495
    %v1533 = vpop.f32.mrf.mxu0
    %v1534 = vadd.f32 0.0, %v1533
    %v1535 = vpop.f32.mrf.mxu0
    %v1536 = vadd.f32 0.0, %v1535
    %1537 = vmatmul.bf16.gmra.mxu0 %v1498
    %v1538 = vpop.f32.mrf.mxu0
    %v1539 = vadd.f32 0.0, %v1538
    %v1540 = vpop.f32.mrf.mxu0
    %v1541 = vadd.f32 0.0, %v1540
    %1542 = vmatmul.bf16.gmra.mxu0 %v1501
    %v1543 = vpop.f32.mrf.mxu0
    %v1544 = vadd.f32 0.0, %v1543
    %v1545 = vpop.f32.mrf.mxu0
    %v1546 = vadd.f32 0.0, %v1545
    %1547 = vmatmul.bf16.gmra.mxu0 %v1504
    %v1548 = vpop.f32.mrf.mxu0
    %v1549 = vadd.f32 0.0, %v1548
    %v1550 = vpop.f32.mrf.mxu0
    %v1551 = vadd.f32 0.0, %v1550
    %1552 = vmatmul.bf16.gmra.mxu0 %v1507
    %v1553 = vpop.f32.mrf.mxu0
    %v1554 = vadd.f32 0.0, %v1553
    %v1555 = vpop.f32.mrf.mxu0
    %v1556 = vadd.f32 0.0, %v1555
    %1557 = vdwg.mxu0
    %1558 = vmax.xlane.f32.xlu0 %v560
    %v1559 = vpop.xlane.xlu0 %1558
    %1560 = vmax.xlane.f32.xlu0 %v562
    %v1561 = vpop.xlane.xlu0 %1560
    %1562 = vmax.xlane.f32.xlu0 %v565
    %v1563 = vpop.xlane.xlu0 %1562
    %1564 = vmax.xlane.f32.xlu0 %v567
    %v1565 = vpop.xlane.xlu0 %1564
    %1566 = vmax.xlane.f32.xlu0 %v570
    %v1567 = vpop.xlane.xlu0 %1566
    %1568 = vmax.xlane.f32.xlu0 %v572
    %v1569 = vpop.xlane.xlu0 %1568
    %1570 = vmax.xlane.f32.xlu0 %v575
    %v1571 = vpop.xlane.xlu0 %1570
    %1572 = vmax.xlane.f32.xlu0 %v577
    %v1573 = vpop.xlane.xlu0 %1572
    %1574 = vmax.xlane.f32.xlu0 %v580
    %v1575 = vpop.xlane.xlu0 %1574
    %1576 = vmax.xlane.f32.xlu0 %v582
    %v1577 = vpop.xlane.xlu0 %1576
    %1578 = vmax.xlane.f32.xlu0 %v585
    %v1579 = vpop.xlane.xlu0 %1578
    %1580 = vmax.xlane.f32.xlu0 %v587
    %v1581 = vpop.xlane.xlu0 %1580
    %1582 = vmax.xlane.f32.xlu0 %v590
    %v1583 = vpop.xlane.xlu0 %1582
    %1584 = vmax.xlane.f32.xlu0 %v592
    %v1585 = vpop.xlane.xlu0 %1584
    %1586 = vmax.xlane.f32.xlu0 %v595
    %v1587 = vpop.xlane.xlu0 %1586
    %1588 = vmax.xlane.f32.xlu0 %v597
    %v1589 = vpop.xlane.xlu0 %1588
    %1590 = vmax.xlane.f32.xlu0 %v697
    %v1591 = vpop.xlane.xlu0 %1590
    %1592 = vmax.xlane.f32.xlu0 %v699
    %v1593 = vpop.xlane.xlu0 %1592
    %1594 = vmax.xlane.f32.xlu0 %v702
    %v1595 = vpop.xlane.xlu0 %1594
    %1596 = vmax.xlane.f32.xlu0 %v704
    %v1597 = vpop.xlane.xlu0 %1596
    %1598 = vmax.xlane.f32.xlu0 %v707
    %v1599 = vpop.xlane.xlu0 %1598
    %1600 = vmax.xlane.f32.xlu0 %v709
    %v1601 = vpop.xlane.xlu0 %1600
    %1602 = vmax.xlane.f32.xlu0 %v712
    %v1603 = vpop.xlane.xlu0 %1602
    %1604 = vmax.xlane.f32.xlu0 %v714
    %v1605 = vpop.xlane.xlu0 %1604
    %1606 = vmax.xlane.f32.xlu0 %v717
    %v1607 = vpop.xlane.xlu0 %1606
    %1608 = vmax.xlane.f32.xlu0 %v719
    %v1609 = vpop.xlane.xlu0 %1608
    %1610 = vmax.xlane.f32.xlu0 %v722
    %v1611 = vpop.xlane.xlu0 %1610
    %1612 = vmax.xlane.f32.xlu0 %v724
    %v1613 = vpop.xlane.xlu0 %1612
    %1614 = vmax.xlane.f32.xlu0 %v727
    %v1615 = vpop.xlane.xlu0 %1614
    %1616 = vmax.xlane.f32.xlu0 %v729
    %v1617 = vpop.xlane.xlu0 %1616
    %1618 = vmax.xlane.f32.xlu0 %v732
    %v1619 = vpop.xlane.xlu0 %1618
    %1620 = vmax.xlane.f32.xlu0 %v734
    %v1621 = vpop.xlane.xlu0 %1620
    %1622 = vmax.xlane.f32.xlu0 %v834
    %v1623 = vpop.xlane.xlu0 %1622
    %1624 = vmax.xlane.f32.xlu0 %v836
    %v1625 = vpop.xlane.xlu0 %1624
    %1626 = vmax.xlane.f32.xlu0 %v839
    %v1627 = vpop.xlane.xlu0 %1626
    %1628 = vmax.xlane.f32.xlu0 %v841
    %v1629 = vpop.xlane.xlu0 %1628
    %1630 = vmax.xlane.f32.xlu0 %v844
    %v1631 = vpop.xlane.xlu0 %1630
    %1632 = vmax.xlane.f32.xlu0 %v846
    %v1633 = vpop.xlane.xlu0 %1632
    %1634 = vmax.xlane.f32.xlu0 %v849
    %v1635 = vpop.xlane.xlu0 %1634
    %1636 = vmax.xlane.f32.xlu0 %v851
    %v1637 = vpop.xlane.xlu0 %1636
    %1638 = vmax.xlane.f32.xlu0 %v854
    %v1639 = vpop.xlane.xlu0 %1638
    %1640 = vmax.xlane.f32.xlu0 %v856
    %v1641 = vpop.xlane.xlu0 %1640
    %1642 = vmax.xlane.f32.xlu0 %v859
    %v1643 = vpop.xlane.xlu0 %1642
    %1644 = vmax.xlane.f32.xlu0 %v861
    %v1645 = vpop.xlane.xlu0 %1644
    %1646 = vmax.xlane.f32.xlu0 %v864
    %v1647 = vpop.xlane.xlu0 %1646
    %1648 = vmax.xlane.f32.xlu0 %v866
    %v1649 = vpop.xlane.xlu0 %1648
    %1650 = vmax.xlane.f32.xlu0 %v869
    %v1651 = vpop.xlane.xlu0 %1650
    %1652 = vmax.xlane.f32.xlu0 %v871
    %v1653 = vpop.xlane.xlu0 %1652
    %1654 = vmax.xlane.f32.xlu0 %v971
    %v1655 = vpop.xlane.xlu0 %1654
    %1656 = vmax.xlane.f32.xlu0 %v973
    %v1657 = vpop.xlane.xlu0 %1656
    %1658 = vmax.xlane.f32.xlu0 %v976
    %v1659 = vpop.xlane.xlu0 %1658
    %1660 = vmax.xlane.f32.xlu0 %v978
    %v1661 = vpop.xlane.xlu0 %1660
    %1662 = vmax.xlane.f32.xlu0 %v981
    %v1663 = vpop.xlane.xlu0 %1662
    %1664 = vmax.xlane.f32.xlu0 %v983
    %v1665 = vpop.xlane.xlu0 %1664
    %1666 = vmax.xlane.f32.xlu0 %v986
    %v1667 = vpop.xlane.xlu0 %1666
    %1668 = vmax.xlane.f32.xlu0 %v988
    %v1669 = vpop.xlane.xlu0 %1668
    %1670 = vmax.xlane.f32.xlu0 %v991
    %v1671 = vpop.xlane.xlu0 %1670
    %1672 = vmax.xlane.f32.xlu0 %v993
    %v1673 = vpop.xlane.xlu0 %1672
    %1674 = vmax.xlane.f32.xlu0 %v996
    %v1675 = vpop.xlane.xlu0 %1674
    %1676 = vmax.xlane.f32.xlu0 %v998
    %v1677 = vpop.xlane.xlu0 %1676
    %1678 = vmax.xlane.f32.xlu0 %v1001
    %v1679 = vpop.xlane.xlu0 %1678
    %1680 = vmax.xlane.f32.xlu0 %v1003
    %v1681 = vpop.xlane.xlu0 %1680
    %1682 = vmax.xlane.f32.xlu0 %v1006
    %v1683 = vpop.xlane.xlu0 %1682
    %1684 = vmax.xlane.f32.xlu0 %v1008
    %v1685 = vpop.xlane.xlu0 %1684
    %1686 = vmax.xlane.f32.xlu0 %v1108
    %v1687 = vpop.xlane.xlu0 %1686
    %1688 = vmax.xlane.f32.xlu0 %v1110
    %v1689 = vpop.xlane.xlu0 %1688
    %1690 = vmax.xlane.f32.xlu0 %v1113
    %v1691 = vpop.xlane.xlu0 %1690
    %1692 = vmax.xlane.f32.xlu0 %v1115
    %v1693 = vpop.xlane.xlu0 %1692
    %1694 = vmax.xlane.f32.xlu0 %v1118
    %v1695 = vpop.xlane.xlu0 %1694
    %1696 = vmax.xlane.f32.xlu0 %v1120
    %v1697 = vpop.xlane.xlu0 %1696
    %1698 = vmax.xlane.f32.xlu0 %v1123
    %v1699 = vpop.xlane.xlu0 %1698
    %1700 = vmax.xlane.f32.xlu0 %v1125
    %v1701 = vpop.xlane.xlu0 %1700
    %1702 = vmax.xlane.f32.xlu0 %v1128
    %v1703 = vpop.xlane.xlu0 %1702
    %1704 = vmax.xlane.f32.xlu0 %v1130
    %v1705 = vpop.xlane.xlu0 %1704
    %1706 = vmax.xlane.f32.xlu0 %v1133
    %v1707 = vpop.xlane.xlu0 %1706
    %1708 = vmax.xlane.f32.xlu0 %v1135
    %v1709 = vpop.xlane.xlu0 %1708
    %1710 = vmax.xlane.f32.xlu0 %v1138
    %v1711 = vpop.xlane.xlu0 %1710
    %1712 = vmax.xlane.f32.xlu0 %v1140
    %v1713 = vpop.xlane.xlu0 %1712
    %1714 = vmax.xlane.f32.xlu0 %v1143
    %v1715 = vpop.xlane.xlu0 %1714
    %1716 = vmax.xlane.f32.xlu0 %v1145
    %v1717 = vpop.xlane.xlu0 %1716
    %1718 = vmax.xlane.f32.xlu0 %v1245
    %v1719 = vpop.xlane.xlu0 %1718
    %1720 = vmax.xlane.f32.xlu0 %v1247
    %v1721 = vpop.xlane.xlu0 %1720
    %1722 = vmax.xlane.f32.xlu0 %v1250
    %v1723 = vpop.xlane.xlu0 %1722
    %1724 = vmax.xlane.f32.xlu0 %v1252
    %v1725 = vpop.xlane.xlu0 %1724
    %1726 = vmax.xlane.f32.xlu0 %v1255
    %v1727 = vpop.xlane.xlu0 %1726
    %1728 = vmax.xlane.f32.xlu0 %v1257
    %v1729 = vpop.xlane.xlu0 %1728
    %1730 = vmax.xlane.f32.xlu0 %v1260
    %v1731 = vpop.xlane.xlu0 %1730
    %1732 = vmax.xlane.f32.xlu0 %v1262
    %v1733 = vpop.xlane.xlu0 %1732
    %1734 = vmax.xlane.f32.xlu0 %v1265
    %v1735 = vpop.xlane.xlu0 %1734
    %1736 = vmax.xlane.f32.xlu0 %v1267
    %v1737 = vpop.xlane.xlu0 %1736
    %1738 = vmax.xlane.f32.xlu0 %v1270
    %v1739 = vpop.xlane.xlu0 %1738
    %1740 = vmax.xlane.f32.xlu0 %v1272
    %v1741 = vpop.xlane.xlu0 %1740
    %1742 = vmax.xlane.f32.xlu0 %v1275
    %v1743 = vpop.xlane.xlu0 %1742
    %1744 = vmax.xlane.f32.xlu0 %v1277
    %v1745 = vpop.xlane.xlu0 %1744
    %1746 = vmax.xlane.f32.xlu0 %v1280
    %v1747 = vpop.xlane.xlu0 %1746
    %1748 = vmax.xlane.f32.xlu0 %v1282
    %v1749 = vpop.xlane.xlu0 %1748
    %1750 = vmax.xlane.f32.xlu0 %v1382
    %v1751 = vpop.xlane.xlu0 %1750
    %1752 = vmax.xlane.f32.xlu0 %v1384
    %v1753 = vpop.xlane.xlu0 %1752
    %1754 = vmax.xlane.f32.xlu0 %v1387
    %v1755 = vpop.xlane.xlu0 %1754
    %1756 = vmax.xlane.f32.xlu0 %v1389
    %v1757 = vpop.xlane.xlu0 %1756
    %1758 = vmax.xlane.f32.xlu0 %v1392
    %v1759 = vpop.xlane.xlu0 %1758
    %1760 = vmax.xlane.f32.xlu0 %v1394
    %v1761 = vpop.xlane.xlu0 %1760
    %1762 = vmax.xlane.f32.xlu0 %v1397
    %v1763 = vpop.xlane.xlu0 %1762
    %1764 = vmax.xlane.f32.xlu0 %v1399
    %v1765 = vpop.xlane.xlu0 %1764
    %1766 = vmax.xlane.f32.xlu0 %v1402
    %v1767 = vpop.xlane.xlu0 %1766
    %1768 = vmax.xlane.f32.xlu0 %v1404
    %v1769 = vpop.xlane.xlu0 %1768
    %1770 = vmax.xlane.f32.xlu0 %v1407
    %v1771 = vpop.xlane.xlu0 %1770
    %1772 = vmax.xlane.f32.xlu0 %v1409
    %v1773 = vpop.xlane.xlu0 %1772
    %1774 = vmax.xlane.f32.xlu0 %v1412
    %v1775 = vpop.xlane.xlu0 %1774
    %1776 = vmax.xlane.f32.xlu0 %v1414
    %v1777 = vpop.xlane.xlu0 %1776
    %1778 = vmax.xlane.f32.xlu0 %v1417
    %v1779 = vpop.xlane.xlu0 %1778
    %1780 = vmax.xlane.f32.xlu0 %v1419
    %v1781 = vpop.xlane.xlu0 %1780
    %1782 = vmax.xlane.f32.xlu0 %v1519
    %v1783 = vpop.xlane.xlu0 %1782
    %1784 = vmax.xlane.f32.xlu0 %v1521
    %v1785 = vpop.xlane.xlu0 %1784
    %1786 = vmax.xlane.f32.xlu0 %v1524
    %v1787 = vpop.xlane.xlu0 %1786
    %1788 = vmax.xlane.f32.xlu0 %v1526
    %v1789 = vpop.xlane.xlu0 %1788
    %1790 = vmax.xlane.f32.xlu0 %v1529
    %v1791 = vpop.xlane.xlu0 %1790
    %1792 = vmax.xlane.f32.xlu0 %v1531
    %v1793 = vpop.xlane.xlu0 %1792
    %1794 = vmax.xlane.f32.xlu0 %v1534
    %v1795 = vpop.xlane.xlu0 %1794
    %1796 = vmax.xlane.f32.xlu0 %v1536
    %v1797 = vpop.xlane.xlu0 %1796
    %1798 = vmax.xlane.f32.xlu0 %v1539
    %v1799 = vpop.xlane.xlu0 %1798
    %1800 = vmax.xlane.f32.xlu0 %v1541
    %v1801 = vpop.xlane.xlu0 %1800
    %1802 = vmax.xlane.f32.xlu0 %v1544
    %v1803 = vpop.xlane.xlu0 %1802
    %1804 = vmax.xlane.f32.xlu0 %v1546
    %v1805 = vpop.xlane.xlu0 %1804
    %1806 = vmax.xlane.f32.xlu0 %v1549
    %v1807 = vpop.xlane.xlu0 %1806
    %1808 = vmax.xlane.f32.xlu0 %v1551
    %v1809 = vpop.xlane.xlu0 %1808
    %1810 = vmax.xlane.f32.xlu0 %v1554
    %v1811 = vpop.xlane.xlu0 %1810
    %1812 = vmax.xlane.f32.xlu0 %v1556
    %v1813 = vpop.xlane.xlu0 %1812
    %v1814 = vsub.f32 %v560, %v1559
    %v1815 = vsub.f32 %v562, %v1561
    %v1816 = vsub.f32 %v565, %v1563
    %v1817 = vsub.f32 %v567, %v1565
    %v1818 = vsub.f32 %v570, %v1567
    %v1819 = vsub.f32 %v572, %v1569
    %v1820 = vsub.f32 %v575, %v1571
    %v1821 = vsub.f32 %v577, %v1573
    %v1822 = vsub.f32 %v580, %v1575
    %v1823 = vsub.f32 %v582, %v1577
    %v1824 = vsub.f32 %v585, %v1579
    %v1825 = vsub.f32 %v587, %v1581
    %v1826 = vsub.f32 %v590, %v1583
    %v1827 = vsub.f32 %v592, %v1585
    %v1828 = vsub.f32 %v595, %v1587
    %v1829 = vsub.f32 %v597, %v1589
    %v1830 = vsub.f32 %v697, %v1591
    %v1831 = vsub.f32 %v699, %v1593
    %v1832 = vsub.f32 %v702, %v1595
    %v1833 = vsub.f32 %v704, %v1597
    %v1834 = vsub.f32 %v707, %v1599
    %v1835 = vsub.f32 %v709, %v1601
    %v1836 = vsub.f32 %v712, %v1603
    %v1837 = vsub.f32 %v714, %v1605
    %v1838 = vsub.f32 %v717, %v1607
    %v1839 = vsub.f32 %v719, %v1609
    %v1840 = vsub.f32 %v722, %v1611
    %v1841 = vsub.f32 %v724, %v1613
    %v1842 = vsub.f32 %v727, %v1615
    %v1843 = vsub.f32 %v729, %v1617
    %v1844 = vsub.f32 %v732, %v1619
    %v1845 = vsub.f32 %v734, %v1621
    %v1846 = vsub.f32 %v834, %v1623
    %v1847 = vsub.f32 %v836, %v1625
    %v1848 = vsub.f32 %v839, %v1627
    %v1849 = vsub.f32 %v841, %v1629
    %v1850 = vsub.f32 %v844, %v1631
    %v1851 = vsub.f32 %v846, %v1633
    %v1852 = vsub.f32 %v849, %v1635
    %v1853 = vsub.f32 %v851, %v1637
    %v1854 = vsub.f32 %v854, %v1639
    %v1855 = vsub.f32 %v856, %v1641
    %v1856 = vsub.f32 %v859, %v1643
    %v1857 = vsub.f32 %v861, %v1645
    %v1858 = vsub.f32 %v864, %v1647
    %v1859 = vsub.f32 %v866, %v1649
    %v1860 = vsub.f32 %v869, %v1651
    %v1861 = vsub.f32 %v871, %v1653
    %v1862 = vsub.f32 %v971, %v1655
    %v1863 = vsub.f32 %v973, %v1657
    %v1864 = vsub.f32 %v976, %v1659
    %v1865 = vsub.f32 %v978, %v1661
    %v1866 = vsub.f32 %v981, %v1663
    %v1867 = vsub.f32 %v983, %v1665
    %v1868 = vsub.f32 %v986, %v1667
    %v1869 = vsub.f32 %v988, %v1669
    %v1870 = vsub.f32 %v991, %v1671
    %v1871 = vsub.f32 %v993, %v1673
    %v1872 = vsub.f32 %v996, %v1675
    %v1873 = vsub.f32 %v998, %v1677
    %v1874 = vsub.f32 %v1001, %v1679
    %v1875 = vsub.f32 %v1003, %v1681
    %v1876 = vsub.f32 %v1006, %v1683
    %v1877 = vsub.f32 %v1008, %v1685
    %v1878 = vsub.f32 %v1108, %v1687
    %v1879 = vsub.f32 %v1110, %v1689
    %v1880 = vsub.f32 %v1113, %v1691
    %v1881 = vsub.f32 %v1115, %v1693
    %v1882 = vsub.f32 %v1118, %v1695
    %v1883 = vsub.f32 %v1120, %v1697
    %v1884 = vsub.f32 %v1123, %v1699
    %v1885 = vsub.f32 %v1125, %v1701
    %v1886 = vsub.f32 %v1128, %v1703
    %v1887 = vsub.f32 %v1130, %v1705
    %v1888 = vsub.f32 %v1133, %v1707
    %v1889 = vsub.f32 %v1135, %v1709
    %v1890 = vsub.f32 %v1138, %v1711
    %v1891 = vsub.f32 %v1140, %v1713
    %v1892 = vsub.f32 %v1143, %v1715
    %v1893 = vsub.f32 %v1145, %v1717
    %v1894 = vsub.f32 %v1245, %v1719
    %v1895 = vsub.f32 %v1247, %v1721
    %v1896 = vsub.f32 %v1250, %v1723
    %v1897 = vsub.f32 %v1252, %v1725
    %v1898 = vsub.f32 %v1255, %v1727
    %v1899 = vsub.f32 %v1257, %v1729
    %v1900 = vsub.f32 %v1260, %v1731
    %v1901 = vsub.f32 %v1262, %v1733
    %v1902 = vsub.f32 %v1265, %v1735
    %v1903 = vsub.f32 %v1267, %v1737
    %v1904 = vsub.f32 %v1270, %v1739
    %v1905 = vsub.f32 %v1272, %v1741
    %v1906 = vsub.f32 %v1275, %v1743
    %v1907 = vsub.f32 %v1277, %v1745
    %v1908 = vsub.f32 %v1280, %v1747
    %v1909 = vsub.f32 %v1282, %v1749
    %v1910 = vsub.f32 %v1382, %v1751
    %v1911 = vsub.f32 %v1384, %v1753
    %v1912 = vsub.f32 %v1387, %v1755
    %v1913 = vsub.f32 %v1389, %v1757
    %v1914 = vsub.f32 %v1392, %v1759
    %v1915 = vsub.f32 %v1394, %v1761
    %v1916 = vsub.f32 %v1397, %v1763
    %v1917 = vsub.f32 %v1399, %v1765
    %v1918 = vsub.f32 %v1402, %v1767
    %v1919 = vsub.f32 %v1404, %v1769
    %v1920 = vsub.f32 %v1407, %v1771
    %v1921 = vsub.f32 %v1409, %v1773
    %v1922 = vsub.f32 %v1412, %v1775
    %v1923 = vsub.f32 %v1414, %v1777
    %v1924 = vsub.f32 %v1417, %v1779
    %v1925 = vsub.f32 %v1419, %v1781
    %v1926 = vsub.f32 %v1519, %v1783
    %v1927 = vsub.f32 %v1521, %v1785
    %v1928 = vsub.f32 %v1524, %v1787
    %v1929 = vsub.f32 %v1526, %v1789
    %v1930 = vsub.f32 %v1529, %v1791
    %v1931 = vsub.f32 %v1531, %v1793
    %v1932 = vsub.f32 %v1534, %v1795
    %v1933 = vsub.f32 %v1536, %v1797
    %v1934 = vsub.f32 %v1539, %v1799
    %v1935 = vsub.f32 %v1541, %v1801
    %v1936 = vsub.f32 %v1544, %v1803
    %v1937 = vsub.f32 %v1546, %v1805
    %v1938 = vsub.f32 %v1549, %v1807
    %v1939 = vsub.f32 %v1551, %v1809
    %v1940 = vsub.f32 %v1554, %v1811
    %v1941 = vsub.f32 %v1556, %v1813
    %v1942 = vmul.f32 %v1814, 1.442695
    %v1943 = vpow.pop %v1942
    %v1944 = vmul.f32 %v1815, 1.442695
    %v1945 = vpow.pop %v1944
    %v1946 = vmul.f32 %v1816, 1.442695
    %v1947 = vpow.pop %v1946
    %v1948 = vmul.f32 %v1817, 1.442695
    %v1949 = vpow.pop %v1948
    %v1950 = vmul.f32 %v1818, 1.442695
    %v1951 = vpow.pop %v1950
    %v1952 = vmul.f32 %v1819, 1.442695
    %v1953 = vpow.pop %v1952
    %v1954 = vmul.f32 %v1820, 1.442695
    %v1955 = vpow.pop %v1954
    %v1956 = vmul.f32 %v1821, 1.442695
    %v1957 = vpow.pop %v1956
    %v1958 = vmul.f32 %v1822, 1.442695
    %v1959 = vpow.pop %v1958
    %v1960 = vmul.f32 %v1823, 1.442695
    %v1961 = vpow.pop %v1960
    %v1962 = vmul.f32 %v1824, 1.442695
    %v1963 = vpow.pop %v1962
    %v1964 = vmul.f32 %v1825, 1.442695
    %v1965 = vpow.pop %v1964
    %v1966 = vmul.f32 %v1826, 1.442695
    %v1967 = vpow.pop %v1966
    %v1968 = vmul.f32 %v1827, 1.442695
    %v1969 = vpow.pop %v1968
    %v1970 = vmul.f32 %v1828, 1.442695
    %v1971 = vpow.pop %v1970
    %v1972 = vmul.f32 %v1829, 1.442695
    %v1973 = vpow.pop %v1972
    %v1974 = vmul.f32 %v1830, 1.442695
    %v1975 = vpow.pop %v1974
    %v1976 = vmul.f32 %v1831, 1.442695
    %v1977 = vpow.pop %v1976
    %v1978 = vmul.f32 %v1832, 1.442695
    %v1979 = vpow.pop %v1978
    %v1980 = vmul.f32 %v1833, 1.442695
    %v1981 = vpow.pop %v1980
    %v1982 = vmul.f32 %v1834, 1.442695
    %v1983 = vpow.pop %v1982
    %v1984 = vmul.f32 %v1835, 1.442695
    %v1985 = vpow.pop %v1984
    %v1986 = vmul.f32 %v1836, 1.442695
    %v1987 = vpow.pop %v1986
    %v1988 = vmul.f32 %v1837, 1.442695
    %v1989 = vpow.pop %v1988
    %v1990 = vmul.f32 %v1838, 1.442695
    %v1991 = vpow.pop %v1990
    %v1992 = vmul.f32 %v1839, 1.442695
    %v1993 = vpow.pop %v1992
    %v1994 = vmul.f32 %v1840, 1.442695
    %v1995 = vpow.pop %v1994
    %v1996 = vmul.f32 %v1841, 1.442695
    %v1997 = vpow.pop %v1996
    %v1998 = vmul.f32 %v1842, 1.442695
    %v1999 = vpow.pop %v1998
    %v2000 = vmul.f32 %v1843, 1.442695
    %v2001 = vpow.pop %v2000
    %v2002 = vmul.f32 %v1844, 1.442695
    %v2003 = vpow.pop %v2002
    %v2004 = vmul.f32 %v1845, 1.442695
    %v2005 = vpow.pop %v2004
    %v2006 = vmul.f32 %v1846, 1.442695
    %v2007 = vpow.pop %v2006
    %v2008 = vmul.f32 %v1847, 1.442695
    %v2009 = vpow.pop %v2008
    %v2010 = vmul.f32 %v1848, 1.442695
    %v2011 = vpow.pop %v2010
    %v2012 = vmul.f32 %v1849, 1.442695
    %v2013 = vpow.pop %v2012
    %v2014 = vmul.f32 %v1850, 1.442695
    %v2015 = vpow.pop %v2014
    %v2016 = vmul.f32 %v1851, 1.442695
    %v2017 = vpow.pop %v2016
    %v2018 = vmul.f32 %v1852, 1.442695
    %v2019 = vpow.pop %v2018
    %v2020 = vmul.f32 %v1853, 1.442695
    %v2021 = vpow.pop %v2020
    %v2022 = vmul.f32 %v1854, 1.442695
    %v2023 = vpow.pop %v2022
    %v2024 = vmul.f32 %v1855, 1.442695
    %v2025 = vpow.pop %v2024
    %v2026 = vmul.f32 %v1856, 1.442695
    %v2027 = vpow.pop %v2026
    %v2028 = vmul.f32 %v1857, 1.442695
    %v2029 = vpow.pop %v2028
    %v2030 = vmul.f32 %v1858, 1.442695
    %v2031 = vpow.pop %v2030
    %v2032 = vmul.f32 %v1859, 1.442695
    %v2033 = vpow.pop %v2032
    %v2034 = vmul.f32 %v1860, 1.442695
    %v2035 = vpow.pop %v2034
    %v2036 = vmul.f32 %v1861, 1.442695
    %v2037 = vpow.pop %v2036
    %v2038 = vmul.f32 %v1862, 1.442695
    %v2039 = vpow.pop %v2038
    %v2040 = vmul.f32 %v1863, 1.442695
    %v2041 = vpow.pop %v2040
    %v2042 = vmul.f32 %v1864, 1.442695
    %v2043 = vpow.pop %v2042
    %v2044 = vmul.f32 %v1865, 1.442695
    %v2045 = vpow.pop %v2044
    %v2046 = vmul.f32 %v1866, 1.442695
    %v2047 = vpow.pop %v2046
    %v2048 = vmul.f32 %v1867, 1.442695
    %v2049 = vpow.pop %v2048
    %v2050 = vmul.f32 %v1868, 1.442695
    %v2051 = vpow.pop %v2050
    %v2052 = vmul.f32 %v1869, 1.442695
    %v2053 = vpow.pop %v2052
    %v2054 = vmul.f32 %v1870, 1.442695
    %v2055 = vpow.pop %v2054
    %v2056 = vmul.f32 %v1871, 1.442695
    %v2057 = vpow.pop %v2056
    %v2058 = vmul.f32 %v1872, 1.442695
    %v2059 = vpow.pop %v2058
    %v2060 = vmul.f32 %v1873, 1.442695
    %v2061 = vpow.pop %v2060
    %v2062 = vmul.f32 %v1874, 1.442695
    %v2063 = vpow.pop %v2062
    %v2064 = vmul.f32 %v1875, 1.442695
    %v2065 = vpow.pop %v2064
    %v2066 = vmul.f32 %v1876, 1.442695
    %v2067 = vpow.pop %v2066
    %v2068 = vmul.f32 %v1877, 1.442695
    %v2069 = vpow.pop %v2068
    %v2070 = vmul.f32 %v1878, 1.442695
    %v2071 = vpow.pop %v2070
    %v2072 = vmul.f32 %v1879, 1.442695
    %v2073 = vpow.pop %v2072
    %v2074 = vmul.f32 %v1880, 1.442695
    %v2075 = vpow.pop %v2074
    %v2076 = vmul.f32 %v1881, 1.442695
    %v2077 = vpow.pop %v2076
    %v2078 = vmul.f32 %v1882, 1.442695
    %v2079 = vpow.pop %v2078
    %v2080 = vmul.f32 %v1883, 1.442695
    %v2081 = vpow.pop %v2080
    %v2082 = vmul.f32 %v1884, 1.442695
    %v2083 = vpow.pop %v2082
    %v2084 = vmul.f32 %v1885, 1.442695
    %v2085 = vpow.pop %v2084
    %v2086 = vmul.f32 %v1886, 1.442695
    %v2087 = vpow.pop %v2086
    %v2088 = vmul.f32 %v1887, 1.442695
    %v2089 = vpow.pop %v2088
    %v2090 = vmul.f32 %v1888, 1.442695
    %v2091 = vpow.pop %v2090
    %v2092 = vmul.f32 %v1889, 1.442695
    %v2093 = vpow.pop %v2092
    %v2094 = vmul.f32 %v1890, 1.442695
    %v2095 = vpow.pop %v2094
    %v2096 = vmul.f32 %v1891, 1.442695
    %v2097 = vpow.pop %v2096
    %v2098 = vmul.f32 %v1892, 1.442695
    %v2099 = vpow.pop %v2098
    %v2100 = vmul.f32 %v1893, 1.442695
    %v2101 = vpow.pop %v2100
    %v2102 = vmul.f32 %v1894, 1.442695
    %v2103 = vpow.pop %v2102
    %v2104 = vmul.f32 %v1895, 1.442695
    %v2105 = vpow.pop %v2104
    %v2106 = vmul.f32 %v1896, 1.442695
    %v2107 = vpow.pop %v2106
    %v2108 = vmul.f32 %v1897, 1.442695
    %v2109 = vpow.pop %v2108
    %v2110 = vmul.f32 %v1898, 1.442695
    %v2111 = vpow.pop %v2110
    %v2112 = vmul.f32 %v1899, 1.442695
    %v2113 = vpow.pop %v2112
    %v2114 = vmul.f32 %v1900, 1.442695
    %v2115 = vpow.pop %v2114
    %v2116 = vmul.f32 %v1901, 1.442695
    %v2117 = vpow.pop %v2116
    %v2118 = vmul.f32 %v1902, 1.442695
    %v2119 = vpow.pop %v2118
    %v2120 = vmul.f32 %v1903, 1.442695
    %v2121 = vpow.pop %v2120
    %v2122 = vmul.f32 %v1904, 1.442695
    %v2123 = vpow.pop %v2122
    %v2124 = vmul.f32 %v1905, 1.442695
    %v2125 = vpow.pop %v2124
    %v2126 = vmul.f32 %v1906, 1.442695
    %v2127 = vpow.pop %v2126
    %v2128 = vmul.f32 %v1907, 1.442695
    %v2129 = vpow.pop %v2128
    %v2130 = vmul.f32 %v1908, 1.442695
    %v2131 = vpow.pop %v2130
    %v2132 = vmul.f32 %v1909, 1.442695
    %v2133 = vpow.pop %v2132
    %v2134 = vmul.f32 %v1910, 1.442695
    %v2135 = vpow.pop %v2134
    %v2136 = vmul.f32 %v1911, 1.442695
    %v2137 = vpow.pop %v2136
    %v2138 = vmul.f32 %v1912, 1.442695
    %v2139 = vpow.pop %v2138
    %v2140 = vmul.f32 %v1913, 1.442695
    %v2141 = vpow.pop %v2140
    %v2142 = vmul.f32 %v1914, 1.442695
    %v2143 = vpow.pop %v2142
    %v2144 = vmul.f32 %v1915, 1.442695
    %v2145 = vpow.pop %v2144
    %v2146 = vmul.f32 %v1916, 1.442695
    %v2147 = vpow.pop %v2146
    %v2148 = vmul.f32 %v1917, 1.442695
    %v2149 = vpow.pop %v2148
    %v2150 = vmul.f32 %v1918, 1.442695
    %v2151 = vpow.pop %v2150
    %v2152 = vmul.f32 %v1919, 1.442695
    %v2153 = vpow.pop %v2152
    %v2154 = vmul.f32 %v1920, 1.442695
    %v2155 = vpow.pop %v2154
    %v2156 = vmul.f32 %v1921, 1.442695
    %v2157 = vpow.pop %v2156
    %v2158 = vmul.f32 %v1922, 1.442695
    %v2159 = vpow.pop %v2158
    %v2160 = vmul.f32 %v1923, 1.442695
    %v2161 = vpow.pop %v2160
    %v2162 = vmul.f32 %v1924, 1.442695
    %v2163 = vpow.pop %v2162
    %v2164 = vmul.f32 %v1925, 1.442695
    %v2165 = vpow.pop %v2164
    %v2166 = vmul.f32 %v1926, 1.442695
    %v2167 = vpow.pop %v2166
    %v2168 = vmul.f32 %v1927, 1.442695
    %v2169 = vpow.pop %v2168
    %v2170 = vmul.f32 %v1928, 1.442695
    %v2171 = vpow.pop %v2170
    %v2172 = vmul.f32 %v1929, 1.442695
    %v2173 = vpow.pop %v2172
    %v2174 = vmul.f32 %v1930, 1.442695
    %v2175 = vpow.pop %v2174
    %v2176 = vmul.f32 %v1931, 1.442695
    %v2177 = vpow.pop %v2176
    %v2178 = vmul.f32 %v1932, 1.442695
    %v2179 = vpow.pop %v2178
    %v2180 = vmul.f32 %v1933, 1.442695
    %v2181 = vpow.pop %v2180
    %v2182 = vmul.f32 %v1934, 1.442695
    %v2183 = vpow.pop %v2182
    %v2184 = vmul.f32 %v1935, 1.442695
    %v2185 = vpow.pop %v2184
    %v2186 = vmul.f32 %v1936, 1.442695
    %v2187 = vpow.pop %v2186
    %v2188 = vmul.f32 %v1937, 1.442695
    %v2189 = vpow.pop %v2188
    %v2190 = vmul.f32 %v1938, 1.442695
    %v2191 = vpow.pop %v2190
    %v2192 = vmul.f32 %v1939, 1.442695
    %v2193 = vpow.pop %v2192
    %v2194 = vmul.f32 %v1940, 1.442695
    %v2195 = vpow.pop %v2194
    %v2196 = vmul.f32 %v1941, 1.442695
    %v2197 = vpow.pop %v2196
    %2198 = vadd.xlane.f32.xlu0 %v1943
    %v2199 = vpop.xlane.xlu0 %2198
    %2200 = vadd.xlane.f32.xlu0 %v1945
    %v2201 = vpop.xlane.xlu0 %2200
    %2202 = vadd.xlane.f32.xlu0 %v1947
    %v2203 = vpop.xlane.xlu0 %2202
    %2204 = vadd.xlane.f32.xlu0 %v1949
    %v2205 = vpop.xlane.xlu0 %2204
    %2206 = vadd.xlane.f32.xlu0 %v1951
    %v2207 = vpop.xlane.xlu0 %2206
    %2208 = vadd.xlane.f32.xlu0 %v1953
    %v2209 = vpop.xlane.xlu0 %2208
    %2210 = vadd.xlane.f32.xlu0 %v1955
    %v2211 = vpop.xlane.xlu0 %2210
    %2212 = vadd.xlane.f32.xlu0 %v1957
    %v2213 = vpop.xlane.xlu0 %2212
    %2214 = vadd.xlane.f32.xlu0 %v1959
    %v2215 = vpop.xlane.xlu0 %2214
    %2216 = vadd.xlane.f32.xlu0 %v1961
    %v2217 = vpop.xlane.xlu0 %2216
    %2218 = vadd.xlane.f32.xlu0 %v1963
    %v2219 = vpop.xlane.xlu0 %2218
    %2220 = vadd.xlane.f32.xlu0 %v1965
    %v2221 = vpop.xlane.xlu0 %2220
    %2222 = vadd.xlane.f32.xlu0 %v1967
    %v2223 = vpop.xlane.xlu0 %2222
    %2224 = vadd.xlane.f32.xlu0 %v1969
    %v2225 = vpop.xlane.xlu0 %2224
    %2226 = vadd.xlane.f32.xlu0 %v1971
    %v2227 = vpop.xlane.xlu0 %2226
    %2228 = vadd.xlane.f32.xlu0 %v1973
    %v2229 = vpop.xlane.xlu0 %2228
    %2230 = vadd.xlane.f32.xlu0 %v1975
    %v2231 = vpop.xlane.xlu0 %2230
    %2232 = vadd.xlane.f32.xlu0 %v1977
    %v2233 = vpop.xlane.xlu0 %2232
    %2234 = vadd.xlane.f32.xlu0 %v1979
    %v2235 = vpop.xlane.xlu0 %2234
    %2236 = vadd.xlane.f32.xlu0 %v1981
    %v2237 = vpop.xlane.xlu0 %2236
    %2238 = vadd.xlane.f32.xlu0 %v1983
    %v2239 = vpop.xlane.xlu0 %2238
    %2240 = vadd.xlane.f32.xlu0 %v1985
    %v2241 = vpop.xlane.xlu0 %2240
    %2242 = vadd.xlane.f32.xlu0 %v1987
    %v2243 = vpop.xlane.xlu0 %2242
    %2244 = vadd.xlane.f32.xlu0 %v1989
    %v2245 = vpop.xlane.xlu0 %2244
    %2246 = vadd.xlane.f32.xlu0 %v1991
    %v2247 = vpop.xlane.xlu0 %2246
    %2248 = vadd.xlane.f32.xlu0 %v1993
    %v2249 = vpop.xlane.xlu0 %2248
    %2250 = vadd.xlane.f32.xlu0 %v1995
    %v2251 = vpop.xlane.xlu0 %2250
    %2252 = vadd.xlane.f32.xlu0 %v1997
    %v2253 = vpop.xlane.xlu0 %2252
    %2254 = vadd.xlane.f32.xlu0 %v1999
    %v2255 = vpop.xlane.xlu0 %2254
    %2256 = vadd.xlane.f32.xlu0 %v2001
    %v2257 = vpop.xlane.xlu0 %2256
    %2258 = vadd.xlane.f32.xlu0 %v2003
    %v2259 = vpop.xlane.xlu0 %2258
    %2260 = vadd.xlane.f32.xlu0 %v2005
    %v2261 = vpop.xlane.xlu0 %2260
    %2262 = vadd.xlane.f32.xlu0 %v2007
    %v2263 = vpop.xlane.xlu0 %2262
    %2264 = vadd.xlane.f32.xlu0 %v2009
    %v2265 = vpop.xlane.xlu0 %2264
    %2266 = vadd.xlane.f32.xlu0 %v2011
    %v2267 = vpop.xlane.xlu0 %2266
    %2268 = vadd.xlane.f32.xlu0 %v2013
    %v2269 = vpop.xlane.xlu0 %2268
    %2270 = vadd.xlane.f32.xlu0 %v2015
    %v2271 = vpop.xlane.xlu0 %2270
    %2272 = vadd.xlane.f32.xlu0 %v2017
    %v2273 = vpop.xlane.xlu0 %2272
    %2274 = vadd.xlane.f32.xlu0 %v2019
    %v2275 = vpop.xlane.xlu0 %2274
    %2276 = vadd.xlane.f32.xlu0 %v2021
    %v2277 = vpop.xlane.xlu0 %2276
    %2278 = vadd.xlane.f32.xlu0 %v2023
    %v2279 = vpop.xlane.xlu0 %2278
    %2280 = vadd.xlane.f32.xlu0 %v2025
    %v2281 = vpop.xlane.xlu0 %2280
    %2282 = vadd.xlane.f32.xlu0 %v2027
    %v2283 = vpop.xlane.xlu0 %2282
    %2284 = vadd.xlane.f32.xlu0 %v2029
    %v2285 = vpop.xlane.xlu0 %2284
    %2286 = vadd.xlane.f32.xlu0 %v2031
    %v2287 = vpop.xlane.xlu0 %2286
    %2288 = vadd.xlane.f32.xlu0 %v2033
    %v2289 = vpop.xlane.xlu0 %2288
    %2290 = vadd.xlane.f32.xlu0 %v2035
    %v2291 = vpop.xlane.xlu0 %2290
    %2292 = vadd.xlane.f32.xlu0 %v2037
    %v2293 = vpop.xlane.xlu0 %2292
    %2294 = vadd.xlane.f32.xlu0 %v2039
    %v2295 = vpop.xlane.xlu0 %2294
    %2296 = vadd.xlane.f32.xlu0 %v2041
    %v2297 = vpop.xlane.xlu0 %2296
    %2298 = vadd.xlane.f32.xlu0 %v2043
    %v2299 = vpop.xlane.xlu0 %2298
    %2300 = vadd.xlane.f32.xlu0 %v2045
    %v2301 = vpop.xlane.xlu0 %2300
    %2302 = vadd.xlane.f32.xlu0 %v2047
    %v2303 = vpop.xlane.xlu0 %2302
    %2304 = vadd.xlane.f32.xlu0 %v2049
    %v2305 = vpop.xlane.xlu0 %2304
    %2306 = vadd.xlane.f32.xlu0 %v2051
    %v2307 = vpop.xlane.xlu0 %2306
    %2308 = vadd.xlane.f32.xlu0 %v2053
    %v2309 = vpop.xlane.xlu0 %2308
    %2310 = vadd.xlane.f32.xlu0 %v2055
    %v2311 = vpop.xlane.xlu0 %2310
    %2312 = vadd.xlane.f32.xlu0 %v2057
    %v2313 = vpop.xlane.xlu0 %2312
    %2314 = vadd.xlane.f32.xlu0 %v2059
    %v2315 = vpop.xlane.xlu0 %2314
    %2316 = vadd.xlane.f32.xlu0 %v2061
    %v2317 = vpop.xlane.xlu0 %2316
    %2318 = vadd.xlane.f32.xlu0 %v2063
    %v2319 = vpop.xlane.xlu0 %2318
    %2320 = vadd.xlane.f32.xlu0 %v2065
    %v2321 = vpop.xlane.xlu0 %2320
    %2322 = vadd.xlane.f32.xlu0 %v2067
    %v2323 = vpop.xlane.xlu0 %2322
    %2324 = vadd.xlane.f32.xlu0 %v2069
    %v2325 = vpop.xlane.xlu0 %2324
    %2326 = vadd.xlane.f32.xlu0 %v2071
    %v2327 = vpop.xlane.xlu0 %2326
    %2328 = vadd.xlane.f32.xlu0 %v2073
    %v2329 = vpop.xlane.xlu0 %2328
    %2330 = vadd.xlane.f32.xlu0 %v2075
    %v2331 = vpop.xlane.xlu0 %2330
    %2332 = vadd.xlane.f32.xlu0 %v2077
    %v2333 = vpop.xlane.xlu0 %2332
    %2334 = vadd.xlane.f32.xlu0 %v2079
    %v2335 = vpop.xlane.xlu0 %2334
    %2336 = vadd.xlane.f32.xlu0 %v2081
    %v2337 = vpop.xlane.xlu0 %2336
    %2338 = vadd.xlane.f32.xlu0 %v2083
    %v2339 = vpop.xlane.xlu0 %2338
    %2340 = vadd.xlane.f32.xlu0 %v2085
    %v2341 = vpop.xlane.xlu0 %2340
    %2342 = vadd.xlane.f32.xlu0 %v2087
    %v2343 = vpop.xlane.xlu0 %2342
    %2344 = vadd.xlane.f32.xlu0 %v2089
    %v2345 = vpop.xlane.xlu0 %2344
    %2346 = vadd.xlane.f32.xlu0 %v2091
    %v2347 = vpop.xlane.xlu0 %2346
    %2348 = vadd.xlane.f32.xlu0 %v2093
    %v2349 = vpop.xlane.xlu0 %2348
    %2350 = vadd.xlane.f32.xlu0 %v2095
    %v2351 = vpop.xlane.xlu0 %2350
    %2352 = vadd.xlane.f32.xlu0 %v2097
    %v2353 = vpop.xlane.xlu0 %2352
    %2354 = vadd.xlane.f32.xlu0 %v2099
    %v2355 = vpop.xlane.xlu0 %2354
    %2356 = vadd.xlane.f32.xlu0 %v2101
    %v2357 = vpop.xlane.xlu0 %2356
    %2358 = vadd.xlane.f32.xlu0 %v2103
    %v2359 = vpop.xlane.xlu0 %2358
    %2360 = vadd.xlane.f32.xlu0 %v2105
    %v2361 = vpop.xlane.xlu0 %2360
    %2362 = vadd.xlane.f32.xlu0 %v2107
    %v2363 = vpop.xlane.xlu0 %2362
    %2364 = vadd.xlane.f32.xlu0 %v2109
    %v2365 = vpop.xlane.xlu0 %2364
    %2366 = vadd.xlane.f32.xlu0 %v2111
    %v2367 = vpop.xlane.xlu0 %2366
    %2368 = vadd.xlane.f32.xlu0 %v2113
    %v2369 = vpop.xlane.xlu0 %2368
    %2370 = vadd.xlane.f32.xlu0 %v2115
    %v2371 = vpop.xlane.xlu0 %2370
    %2372 = vadd.xlane.f32.xlu0 %v2117
    %v2373 = vpop.xlane.xlu0 %2372
    %2374 = vadd.xlane.f32.xlu0 %v2119
    %v2375 = vpop.xlane.xlu0 %2374
    %2376 = vadd.xlane.f32.xlu0 %v2121
    %v2377 = vpop.xlane.xlu0 %2376
    %2378 = vadd.xlane.f32.xlu0 %v2123
    %v2379 = vpop.xlane.xlu0 %2378
    %2380 = vadd.xlane.f32.xlu0 %v2125
    %v2381 = vpop.xlane.xlu0 %2380
    %2382 = vadd.xlane.f32.xlu0 %v2127
    %v2383 = vpop.xlane.xlu0 %2382
    %2384 = vadd.xlane.f32.xlu0 %v2129
    %v2385 = vpop.xlane.xlu0 %2384
    %2386 = vadd.xlane.f32.xlu0 %v2131
    %v2387 = vpop.xlane.xlu0 %2386
    %2388 = vadd.xlane.f32.xlu0 %v2133
    %v2389 = vpop.xlane.xlu0 %2388
    %2390 = vadd.xlane.f32.xlu0 %v2135
    %v2391 = vpop.xlane.xlu0 %2390
    %2392 = vadd.xlane.f32.xlu0 %v2137
    %v2393 = vpop.xlane.xlu0 %2392
    %2394 = vadd.xlane.f32.xlu0 %v2139
    %v2395 = vpop.xlane.xlu0 %2394
    %2396 = vadd.xlane.f32.xlu0 %v2141
    %v2397 = vpop.xlane.xlu0 %2396
    %2398 = vadd.xlane.f32.xlu0 %v2143
    %v2399 = vpop.xlane.xlu0 %2398
    %2400 = vadd.xlane.f32.xlu0 %v2145
    %v2401 = vpop.xlane.xlu0 %2400
    %2402 = vadd.xlane.f32.xlu0 %v2147
    %v2403 = vpop.xlane.xlu0 %2402
    %2404 = vadd.xlane.f32.xlu0 %v2149
    %v2405 = vpop.xlane.xlu0 %2404
    %2406 = vadd.xlane.f32.xlu0 %v2151
    %v2407 = vpop.xlane.xlu0 %2406
    %2408 = vadd.xlane.f32.xlu0 %v2153
    %v2409 = vpop.xlane.xlu0 %2408
    %2410 = vadd.xlane.f32.xlu0 %v2155
    %v2411 = vpop.xlane.xlu0 %2410
    %2412 = vadd.xlane.f32.xlu0 %v2157
    %v2413 = vpop.xlane.xlu0 %2412
    %2414 = vadd.xlane.f32.xlu0 %v2159
    %v2415 = vpop.xlane.xlu0 %2414
    %2416 = vadd.xlane.f32.xlu0 %v2161
    %v2417 = vpop.xlane.xlu0 %2416
    %2418 = vadd.xlane.f32.xlu0 %v2163
    %v2419 = vpop.xlane.xlu0 %2418
    %2420 = vadd.xlane.f32.xlu0 %v2165
    %v2421 = vpop.xlane.xlu0 %2420
    %2422 = vadd.xlane.f32.xlu0 %v2167
    %v2423 = vpop.xlane.xlu0 %2422
    %2424 = vadd.xlane.f32.xlu0 %v2169
    %v2425 = vpop.xlane.xlu0 %2424
    %2426 = vadd.xlane.f32.xlu0 %v2171
    %v2427 = vpop.xlane.xlu0 %2426
    %2428 = vadd.xlane.f32.xlu0 %v2173
    %v2429 = vpop.xlane.xlu0 %2428
    %2430 = vadd.xlane.f32.xlu0 %v2175
    %v2431 = vpop.xlane.xlu0 %2430
    %2432 = vadd.xlane.f32.xlu0 %v2177
    %v2433 = vpop.xlane.xlu0 %2432
    %2434 = vadd.xlane.f32.xlu0 %v2179
    %v2435 = vpop.xlane.xlu0 %2434
    %2436 = vadd.xlane.f32.xlu0 %v2181
    %v2437 = vpop.xlane.xlu0 %2436
    %2438 = vadd.xlane.f32.xlu0 %v2183
    %v2439 = vpop.xlane.xlu0 %2438
    %2440 = vadd.xlane.f32.xlu0 %v2185
    %v2441 = vpop.xlane.xlu0 %2440
    %2442 = vadd.xlane.f32.xlu0 %v2187
    %v2443 = vpop.xlane.xlu0 %2442
    %2444 = vadd.xlane.f32.xlu0 %v2189
    %v2445 = vpop.xlane.xlu0 %2444
    %2446 = vadd.xlane.f32.xlu0 %v2191
    %v2447 = vpop.xlane.xlu0 %2446
    %2448 = vadd.xlane.f32.xlu0 %v2193
    %v2449 = vpop.xlane.xlu0 %2448
    %2450 = vadd.xlane.f32.xlu0 %v2195
    %v2451 = vpop.xlane.xlu0 %2450
    %2452 = vadd.xlane.f32.xlu0 %v2197
    %v2453 = vpop.xlane.xlu0 %2452
    %v2454 = vrcp.pop %v2199
    %v2455 = vrcp.pop %v2201
    %v2456 = vrcp.pop %v2203
    %v2457 = vrcp.pop %v2205
    %v2458 = vrcp.pop %v2207
    %v2459 = vrcp.pop %v2209
    %v2460 = vrcp.pop %v2211
    %v2461 = vrcp.pop %v2213
    %v2462 = vrcp.pop %v2215
    %v2463 = vrcp.pop %v2217
    %v2464 = vrcp.pop %v2219
    %v2465 = vrcp.pop %v2221
    %v2466 = vrcp.pop %v2223
    %v2467 = vrcp.pop %v2225
    %v2468 = vrcp.pop %v2227
    %v2469 = vrcp.pop %v2229
    %v2470 = vrcp.pop %v2231
    %v2471 = vrcp.pop %v2233
    %v2472 = vrcp.pop %v2235
    %v2473 = vrcp.pop %v2237
    %v2474 = vrcp.pop %v2239
    %v2475 = vrcp.pop %v2241
    %v2476 = vrcp.pop %v2243
    %v2477 = vrcp.pop %v2245
    %v2478 = vrcp.pop %v2247
    %v2479 = vrcp.pop %v2249
    %v2480 = vrcp.pop %v2251
    %v2481 = vrcp.pop %v2253
    %v2482 = vrcp.pop %v2255
    %v2483 = vrcp.pop %v2257
    %v2484 = vrcp.pop %v2259
    %v2485 = vrcp.pop %v2261
    %v2486 = vrcp.pop %v2263
    %v2487 = vrcp.pop %v2265
    %v2488 = vrcp.pop %v2267
    %v2489 = vrcp.pop %v2269
    %v2490 = vrcp.pop %v2271
    %v2491 = vrcp.pop %v2273
    %v2492 = vrcp.pop %v2275
    %v2493 = vrcp.pop %v2277
    %v2494 = vrcp.pop %v2279
    %v2495 = vrcp.pop %v2281
    %v2496 = vrcp.pop %v2283
    %v2497 = vrcp.pop %v2285
    %v2498 = vrcp.pop %v2287
    %v2499 = vrcp.pop %v2289
    %v2500 = vrcp.pop %v2291
    %v2501 = vrcp.pop %v2293
    %v2502 = vrcp.pop %v2295
    %v2503 = vrcp.pop %v2297
    %v2504 = vrcp.pop %v2299
    %v2505 = vrcp.pop %v2301
    %v2506 = vrcp.pop %v2303
    %v2507 = vrcp.pop %v2305
    %v2508 = vrcp.pop %v2307
    %v2509 = vrcp.pop %v2309
    %v2510 = vrcp.pop %v2311
    %v2511 = vrcp.pop %v2313
    %v2512 = vrcp.pop %v2315
    %v2513 = vrcp.pop %v2317
    %v2514 = vrcp.pop %v2319
    %v2515 = vrcp.pop %v2321
    %v2516 = vrcp.pop %v2323
    %v2517 = vrcp.pop %v2325
    %v2518 = vrcp.pop %v2327
    %v2519 = vrcp.pop %v2329
    %v2520 = vrcp.pop %v2331
    %v2521 = vrcp.pop %v2333
    %v2522 = vrcp.pop %v2335
    %v2523 = vrcp.pop %v2337
    %v2524 = vrcp.pop %v2339
    %v2525 = vrcp.pop %v2341
    %v2526 = vrcp.pop %v2343
    %v2527 = vrcp.pop %v2345
    %v2528 = vrcp.pop %v2347
    %v2529 = vrcp.pop %v2349
    %v2530 = vrcp.pop %v2351
    %v2531 = vrcp.pop %v2353
    %v2532 = vrcp.pop %v2355
    %v2533 = vrcp.pop %v2357
    %v2534 = vrcp.pop %v2359
    %v2535 = vrcp.pop %v2361
    %v2536 = vrcp.pop %v2363
    %v2537 = vrcp.pop %v2365
    %v2538 = vrcp.pop %v2367
    %v2539 = vrcp.pop %v2369
    %v2540 = vrcp.pop %v2371
    %v2541 = vrcp.pop %v2373
    %v2542 = vrcp.pop %v2375
    %v2543 = vrcp.pop %v2377
    %v2544 = vrcp.pop %v2379
    %v2545 = vrcp.pop %v2381
    %v2546 = vrcp.pop %v2383
    %v2547 = vrcp.pop %v2385
    %v2548 = vrcp.pop %v2387
    %v2549 = vrcp.pop %v2389
    %v2550 = vrcp.pop %v2391
    %v2551 = vrcp.pop %v2393
    %v2552 = vrcp.pop %v2395
    %v2553 = vrcp.pop %v2397
    %v2554 = vrcp.pop %v2399
    %v2555 = vrcp.pop %v2401
    %v2556 = vrcp.pop %v2403
    %v2557 = vrcp.pop %v2405
    %v2558 = vrcp.pop %v2407
    %v2559 = vrcp.pop %v2409
    %v2560 = vrcp.pop %v2411
    %v2561 = vrcp.pop %v2413
    %v2562 = vrcp.pop %v2415
    %v2563 = vrcp.pop %v2417
    %v2564 = vrcp.pop %v2419
    %v2565 = vrcp.pop %v2421
    %v2566 = vrcp.pop %v2423
    %v2567 = vrcp.pop %v2425
    %v2568 = vrcp.pop %v2427
    %v2569 = vrcp.pop %v2429
    %v2570 = vrcp.pop %v2431
    %v2571 = vrcp.pop %v2433
    %v2572 = vrcp.pop %v2435
    %v2573 = vrcp.pop %v2437
    %v2574 = vrcp.pop %v2439
    %v2575 = vrcp.pop %v2441
    %v2576 = vrcp.pop %v2443
    %v2577 = vrcp.pop %v2445
    %v2578 = vrcp.pop %v2447
    %v2579 = vrcp.pop %v2449
    %v2580 = vrcp.pop %v2451
    %v2581 = vrcp.pop %v2453
    %v2582 = vmul.f32 %v1943, %v2454
    %v2583 = vmul.f32 %v1945, %v2455
    %v2584 = vmul.f32 %v1947, %v2456
    %v2585 = vmul.f32 %v1949, %v2457
    %v2586 = vmul.f32 %v1951, %v2458
    %v2587 = vmul.f32 %v1953, %v2459
    %v2588 = vmul.f32 %v1955, %v2460
    %v2589 = vmul.f32 %v1957, %v2461
    %v2590 = vmul.f32 %v1959, %v2462
    %v2591 = vmul.f32 %v1961, %v2463
    %v2592 = vmul.f32 %v1963, %v2464
    %v2593 = vmul.f32 %v1965, %v2465
    %v2594 = vmul.f32 %v1967, %v2466
    %v2595 = vmul.f32 %v1969, %v2467
    %v2596 = vmul.f32 %v1971, %v2468
    %v2597 = vmul.f32 %v1973, %v2469
    %v2598 = vmul.f32 %v1975, %v2470
    %v2599 = vmul.f32 %v1977, %v2471
    %v2600 = vmul.f32 %v1979, %v2472
    %v2601 = vmul.f32 %v1981, %v2473
    %v2602 = vmul.f32 %v1983, %v2474
    %v2603 = vmul.f32 %v1985, %v2475
    %v2604 = vmul.f32 %v1987, %v2476
    %v2605 = vmul.f32 %v1989, %v2477
    %v2606 = vmul.f32 %v1991, %v2478
    %v2607 = vmul.f32 %v1993, %v2479
    %v2608 = vmul.f32 %v1995, %v2480
    %v2609 = vmul.f32 %v1997, %v2481
    %v2610 = vmul.f32 %v1999, %v2482
    %v2611 = vmul.f32 %v2001, %v2483
    %v2612 = vmul.f32 %v2003, %v2484
    %v2613 = vmul.f32 %v2005, %v2485
    %v2614 = vmul.f32 %v2007, %v2486
    %v2615 = vmul.f32 %v2009, %v2487
    %v2616 = vmul.f32 %v2011, %v2488
    %v2617 = vmul.f32 %v2013, %v2489
    %v2618 = vmul.f32 %v2015, %v2490
    %v2619 = vmul.f32 %v2017, %v2491
    %v2620 = vmul.f32 %v2019, %v2492
    %v2621 = vmul.f32 %v2021, %v2493
    %v2622 = vmul.f32 %v2023, %v2494
    %v2623 = vmul.f32 %v2025, %v2495
    %v2624 = vmul.f32 %v2027, %v2496
    %v2625 = vmul.f32 %v2029, %v2497
    %v2626 = vmul.f32 %v2031, %v2498
    %v2627 = vmul.f32 %v2033, %v2499
    %v2628 = vmul.f32 %v2035, %v2500
    %v2629 = vmul.f32 %v2037, %v2501
    %v2630 = vmul.f32 %v2039, %v2502
    %v2631 = vmul.f32 %v2041, %v2503
    %v2632 = vmul.f32 %v2043, %v2504
    %v2633 = vmul.f32 %v2045, %v2505
    %v2634 = vmul.f32 %v2047, %v2506
    %v2635 = vmul.f32 %v2049, %v2507
    %v2636 = vmul.f32 %v2051, %v2508
    %v2637 = vmul.f32 %v2053, %v2509
    %v2638 = vmul.f32 %v2055, %v2510
    %v2639 = vmul.f32 %v2057, %v2511
    %v2640 = vmul.f32 %v2059, %v2512
    %v2641 = vmul.f32 %v2061, %v2513
    %v2642 = vmul.f32 %v2063, %v2514
    %v2643 = vmul.f32 %v2065, %v2515
    %v2644 = vmul.f32 %v2067, %v2516
    %v2645 = vmul.f32 %v2069, %v2517
    %v2646 = vmul.f32 %v2071, %v2518
    %v2647 = vmul.f32 %v2073, %v2519
    %v2648 = vmul.f32 %v2075, %v2520
    %v2649 = vmul.f32 %v2077, %v2521
    %v2650 = vmul.f32 %v2079, %v2522
    %v2651 = vmul.f32 %v2081, %v2523
    %v2652 = vmul.f32 %v2083, %v2524
    %v2653 = vmul.f32 %v2085, %v2525
    %v2654 = vmul.f32 %v2087, %v2526
    %v2655 = vmul.f32 %v2089, %v2527
    %v2656 = vmul.f32 %v2091, %v2528
    %v2657 = vmul.f32 %v2093, %v2529
    %v2658 = vmul.f32 %v2095, %v2530
    %v2659 = vmul.f32 %v2097, %v2531
    %v2660 = vmul.f32 %v2099, %v2532
    %v2661 = vmul.f32 %v2101, %v2533
    %v2662 = vmul.f32 %v2103, %v2534
    %v2663 = vmul.f32 %v2105, %v2535
    %v2664 = vmul.f32 %v2107, %v2536
    %v2665 = vmul.f32 %v2109, %v2537
    %v2666 = vmul.f32 %v2111, %v2538
    %v2667 = vmul.f32 %v2113, %v2539
    %v2668 = vmul.f32 %v2115, %v2540
    %v2669 = vmul.f32 %v2117, %v2541
    %v2670 = vmul.f32 %v2119, %v2542
    %v2671 = vmul.f32 %v2121, %v2543
    %v2672 = vmul.f32 %v2123, %v2544
    %v2673 = vmul.f32 %v2125, %v2545
    %v2674 = vmul.f32 %v2127, %v2546
    %v2675 = vmul.f32 %v2129, %v2547
    %v2676 = vmul.f32 %v2131, %v2548
    %v2677 = vmul.f32 %v2133, %v2549
    %v2678 = vmul.f32 %v2135, %v2550
    %v2679 = vmul.f32 %v2137, %v2551
    %v2680 = vmul.f32 %v2139, %v2552
    %v2681 = vmul.f32 %v2141, %v2553
    %v2682 = vmul.f32 %v2143, %v2554
    %v2683 = vmul.f32 %v2145, %v2555
    %v2684 = vmul.f32 %v2147, %v2556
    %v2685 = vmul.f32 %v2149, %v2557
    %v2686 = vmul.f32 %v2151, %v2558
    %v2687 = vmul.f32 %v2153, %v2559
    %v2688 = vmul.f32 %v2155, %v2560
    %v2689 = vmul.f32 %v2157, %v2561
    %v2690 = vmul.f32 %v2159, %v2562
    %v2691 = vmul.f32 %v2161, %v2563
    %v2692 = vmul.f32 %v2163, %v2564
    %v2693 = vmul.f32 %v2165, %v2565
    %v2694 = vmul.f32 %v2167, %v2566
    %v2695 = vmul.f32 %v2169, %v2567
    %v2696 = vmul.f32 %v2171, %v2568
    %v2697 = vmul.f32 %v2173, %v2569
    %v2698 = vmul.f32 %v2175, %v2570
    %v2699 = vmul.f32 %v2177, %v2571
    %v2700 = vmul.f32 %v2179, %v2572
    %v2701 = vmul.f32 %v2181, %v2573
    %v2702 = vmul.f32 %v2183, %v2574
    %v2703 = vmul.f32 %v2185, %v2575
    %v2704 = vmul.f32 %v2187, %v2576
    %v2705 = vmul.f32 %v2189, %v2577
    %v2706 = vmul.f32 %v2191, %v2578
    %v2707 = vmul.f32 %v2193, %v2579
    %v2708 = vmul.f32 %v2195, %v2580
    %v2709 = vmul.f32 %v2197, %v2581
    %2710 = vst [vmem:[#allocation2] sm:$0xff] %v2582
    %2711 = vst [vmem:[#allocation2 + $0x8] sm:$0xff] %v2583
    %2712 = vst [vmem:[#allocation2 + $0x10] sm:$0xff] %v2584
    %2713 = vst [vmem:[#allocation2 + $0x18] sm:$0xff] %v2585
    %2714 = vst [vmem:[#allocation2 + $0x20] sm:$0xff] %v2586
    %2715 = vst [vmem:[#allocation2 + $0x28] sm:$0xff] %v2587
    %2716 = vst [vmem:[#allocation2 + $0x30] sm:$0xff] %v2588
    %2717 = vst [vmem:[#allocation2 + $0x38] sm:$0xff] %v2589
    %2718 = vst [vmem:[#allocation2 + $0x40] sm:$0xff] %v2590
    %2719 = vst [vmem:[#allocation2 + $0x48] sm:$0xff] %v2591
    %2720 = vst [vmem:[#allocation2 + $0x50] sm:$0xff] %v2592
    %2721 = vst [vmem:[#allocation2 + $0x58] sm:$0xff] %v2593
    %2722 = vst [vmem:[#allocation2 + $0x60] sm:$0xff] %v2594
    %2723 = vst [vmem:[#allocation2 + $0x68] sm:$0xff] %v2595
    %2724 = vst [vmem:[#allocation2 + $0x70] sm:$0xff] %v2596
    %2725 = vst [vmem:[#allocation2 + $0x78] sm:$0xff] %v2597
    %2726 = vst [vmem:[#allocation2 + $0x80] sm:$0xff] %v2598
    %2727 = vst [vmem:[#allocation2 + $0x88] sm:$0xff] %v2599
    %2728 = vst [vmem:[#allocation2 + $0x90] sm:$0xff] %v2600
    %2729 = vst [vmem:[#allocation2 + $0x98] sm:$0xff] %v2601
    %2730 = vst [vmem:[#allocation2 + $0xa0] sm:$0xff] %v2602
    %2731 = vst [vmem:[#allocation2 + $0xa8] sm:$0xff] %v2603
    %2732 = vst [vmem:[#allocation2 + $0xb0] sm:$0xff] %v2604
    %2733 = vst [vmem:[#allocation2 + $0xb8] sm:$0xff] %v2605
    %2734 = vst [vmem:[#allocation2 + $0xc0] sm:$0xff] %v2606
    %2735 = vst [vmem:[#allocation2 + $0xc8] sm:$0xff] %v2607
    %2736 = vst [vmem:[#allocation2 + $0xd0] sm:$0xff] %v2608
    %2737 = vst [vmem:[#allocation2 + $0xd8] sm:$0xff] %v2609
    %2738 = vst [vmem:[#allocation2 + $0xe0] sm:$0xff] %v2610
    %2739 = vst [vmem:[#allocation2 + $0xe8] sm:$0xff] %v2611
    %2740 = vst [vmem:[#allocation2 + $0xf0] sm:$0xff] %v2612
    %2741 = vst [vmem:[#allocation2 + $0xf8] sm:$0xff] %v2613
    %2742 = vst [vmem:[#allocation2 + $0x100] sm:$0xff] %v2614
    %2743 = vst [vmem:[#allocation2 + $0x108] sm:$0xff] %v2615
    %2744 = vst [vmem:[#allocation2 + $0x110] sm:$0xff] %v2616
    %2745 = vst [vmem:[#allocation2 + $0x118] sm:$0xff] %v2617
    %2746 = vst [vmem:[#allocation2 + $0x120] sm:$0xff] %v2618
    %2747 = vst [vmem:[#allocation2 + $0x128] sm:$0xff] %v2619
    %2748 = vst [vmem:[#allocation2 + $0x130] sm:$0xff] %v2620
    %2749 = vst [vmem:[#allocation2 + $0x138] sm:$0xff] %v2621
    %2750 = vst [vmem:[#allocation2 + $0x140] sm:$0xff] %v2622
    %2751 = vst [vmem:[#allocation2 + $0x148] sm:$0xff] %v2623
    %2752 = vst [vmem:[#allocation2 + $0x150] sm:$0xff] %v2624
    %2753 = vst [vmem:[#allocation2 + $0x158] sm:$0xff] %v2625
    %2754 = vst [vmem:[#allocation2 + $0x160] sm:$0xff] %v2626
    %2755 = vst [vmem:[#allocation2 + $0x168] sm:$0xff] %v2627
    %2756 = vst [vmem:[#allocation2 + $0x170] sm:$0xff] %v2628
    %2757 = vst [vmem:[#allocation2 + $0x178] sm:$0xff] %v2629
    %2758 = vst [vmem:[#allocation2 + $0x180] sm:$0xff] %v2630
    %2759 = vst [vmem:[#allocation2 + $0x188] sm:$0xff] %v2631
    %2760 = vst [vmem:[#allocation2 + $0x190] sm:$0xff] %v2632
    %2761 = vst [vmem:[#allocation2 + $0x198] sm:$0xff] %v2633
    %2762 = vst [vmem:[#allocation2 + $0x1a0] sm:$0xff] %v2634
    %2763 = vst [vmem:[#allocation2 + $0x1a8] sm:$0xff] %v2635
    %2764 = vst [vmem:[#allocation2 + $0x1b0] sm:$0xff] %v2636
    %2765 = vst [vmem:[#allocation2 + $0x1b8] sm:$0xff] %v2637
    %2766 = vst [vmem:[#allocation2 + $0x1c0] sm:$0xff] %v2638
    %2767 = vst [vmem:[#allocation2 + $0x1c8] sm:$0xff] %v2639
    %2768 = vst [vmem:[#allocation2 + $0x1d0] sm:$0xff] %v2640
    %2769 = vst [vmem:[#allocation2 + $0x1d8] sm:$0xff] %v2641
    %2770 = vst [vmem:[#allocation2 + $0x1e0] sm:$0xff] %v2642
    %2771 = vst [vmem:[#allocation2 + $0x1e8] sm:$0xff] %v2643
    %2772 = vst [vmem:[#allocation2 + $0x1f0] sm:$0xff] %v2644
    %2773 = vst [vmem:[#allocation2 + $0x1f8] sm:$0xff] %v2645
    %2774 = vst [vmem:[#allocation2 + $0x200] sm:$0xff] %v2646
    %2775 = vst [vmem:[#allocation2 + $0x208] sm:$0xff] %v2647
    %2776 = vst [vmem:[#allocation2 + $0x210] sm:$0xff] %v2648
    %2777 = vst [vmem:[#allocation2 + $0x218] sm:$0xff] %v2649
    %2778 = vst [vmem:[#allocation2 + $0x220] sm:$0xff] %v2650
    %2779 = vst [vmem:[#allocation2 + $0x228] sm:$0xff] %v2651
    %2780 = vst [vmem:[#allocation2 + $0x230] sm:$0xff] %v2652
    %2781 = vst [vmem:[#allocation2 + $0x238] sm:$0xff] %v2653
    %2782 = vst [vmem:[#allocation2 + $0x240] sm:$0xff] %v2654
    %2783 = vst [vmem:[#allocation2 + $0x248] sm:$0xff] %v2655
    %2784 = vst [vmem:[#allocation2 + $0x250] sm:$0xff] %v2656
    %2785 = vst [vmem:[#allocation2 + $0x258] sm:$0xff] %v2657
    %2786 = vst [vmem:[#allocation2 + $0x260] sm:$0xff] %v2658
    %2787 = vst [vmem:[#allocation2 + $0x268] sm:$0xff] %v2659
    %2788 = vst [vmem:[#allocation2 + $0x270] sm:$0xff] %v2660
    %2789 = vst [vmem:[#allocation2 + $0x278] sm:$0xff] %v2661
    %2790 = vst [vmem:[#allocation2 + $0x280] sm:$0xff] %v2662
    %2791 = vst [vmem:[#allocation2 + $0x288] sm:$0xff] %v2663
    %2792 = vst [vmem:[#allocation2 + $0x290] sm:$0xff] %v2664
    %2793 = vst [vmem:[#allocation2 + $0x298] sm:$0xff] %v2665
    %2794 = vst [vmem:[#allocation2 + $0x2a0] sm:$0xff] %v2666
    %2795 = vst [vmem:[#allocation2 + $0x2a8] sm:$0xff] %v2667
    %2796 = vst [vmem:[#allocation2 + $0x2b0] sm:$0xff] %v2668
    %2797 = vst [vmem:[#allocation2 + $0x2b8] sm:$0xff] %v2669
    %2798 = vst [vmem:[#allocation2 + $0x2c0] sm:$0xff] %v2670
    %2799 = vst [vmem:[#allocation2 + $0x2c8] sm:$0xff] %v2671
    %2800 = vst [vmem:[#allocation2 + $0x2d0] sm:$0xff] %v2672
    %2801 = vst [vmem:[#allocation2 + $0x2d8] sm:$0xff] %v2673
    %2802 = vst [vmem:[#allocation2 + $0x2e0] sm:$0xff] %v2674
    %2803 = vst [vmem:[#allocation2 + $0x2e8] sm:$0xff] %v2675
    %2804 = vst [vmem:[#allocation2 + $0x2f0] sm:$0xff] %v2676
    %2805 = vst [vmem:[#allocation2 + $0x2f8] sm:$0xff] %v2677
    %2806 = vst [vmem:[#allocation2 + $0x300] sm:$0xff] %v2678
    %2807 = vst [vmem:[#allocation2 + $0x308] sm:$0xff] %v2679
    %2808 = vst [vmem:[#allocation2 + $0x310] sm:$0xff] %v2680
    %2809 = vst [vmem:[#allocation2 + $0x318] sm:$0xff] %v2681
    %2810 = vst [vmem:[#allocation2 + $0x320] sm:$0xff] %v2682
    %2811 = vst [vmem:[#allocation2 + $0x328] sm:$0xff] %v2683
    %2812 = vst [vmem:[#allocation2 + $0x330] sm:$0xff] %v2684
    %2813 = vst [vmem:[#allocation2 + $0x338] sm:$0xff] %v2685
    %2814 = vst [vmem:[#allocation2 + $0x340] sm:$0xff] %v2686
    %2815 = vst [vmem:[#allocation2 + $0x348] sm:$0xff] %v2687
    %2816 = vst [vmem:[#allocation2 + $0x350] sm:$0xff] %v2688
    %2817 = vst [vmem:[#allocation2 + $0x358] sm:$0xff] %v2689
    %2818 = vst [vmem:[#allocation2 + $0x360] sm:$0xff] %v2690
    %2819 = vst [vmem:[#allocation2 + $0x368] sm:$0xff] %v2691
    %2820 = vst [vmem:[#allocation2 + $0x370] sm:$0xff] %v2692
    %2821 = vst [vmem:[#allocation2 + $0x378] sm:$0xff] %v2693
    %2822 = vst [vmem:[#allocation2 + $0x380] sm:$0xff] %v2694
    %2823 = vst [vmem:[#allocation2 + $0x388] sm:$0xff] %v2695
    %2824 = vst [vmem:[#allocation2 + $0x390] sm:$0xff] %v2696
    %2825 = vst [vmem:[#allocation2 + $0x398] sm:$0xff] %v2697
    %2826 = vst [vmem:[#allocation2 + $0x3a0] sm:$0xff] %v2698
    %2827 = vst [vmem:[#allocation2 + $0x3a8] sm:$0xff] %v2699
    %2828 = vst [vmem:[#allocation2 + $0x3b0] sm:$0xff] %v2700
    %2829 = vst [vmem:[#allocation2 + $0x3b8] sm:$0xff] %v2701
    %2830 = vst [vmem:[#allocation2 + $0x3c0] sm:$0xff] %v2702
    %2831 = vst [vmem:[#allocation2 + $0x3c8] sm:$0xff] %v2703
    %2832 = vst [vmem:[#allocation2 + $0x3d0] sm:$0xff] %v2704
    %2833 = vst [vmem:[#allocation2 + $0x3d8] sm:$0xff] %v2705
    %2834 = vst [vmem:[#allocation2 + $0x3e0] sm:$0xff] %v2706
    %2835 = vst [vmem:[#allocation2 + $0x3e8] sm:$0xff] %v2707
    %2836 = vst [vmem:[#allocation2 + $0x3f0] sm:$0xff] %v2708
    %2837 = vst [vmem:[#allocation2 + $0x3f8] sm:$0xff] %v2709
    // Predicated region
    $region10: #{tpu_custom_call.1} parent=1 // pred_check
      _
    $region11: #{tpu_custom_call.1} parent=1 // pred_check_branch
      %2839 = sbr.rel (0) target = $region13
    $region12: #{tpu_custom_call.1} parent=1 // pred_region
      %2841 = vsyncadd [#allocation3], 0
      %s2842 = sshll.u32 [#allocation2], 4
      %s2843 = int_to_ptr.vmem [resolvable:$true] %s2842
      %s2844 = sshll.u32 %s2, 4
      %s2845 = int_to_ptr.hbm [resolvable:$true] %s2844
      %2850 = dma.vmem_to_hbm [thread:$0]  %s2843, 16384, %s2845, [#allocation3], 128, 128, 8
    $region13: #{tpu_custom_call.1} parent=1 // pred_fallthru
      _
    // Predicated region
    $region14: #{tpu_custom_call.1} parent=1 // pred_check
      _
    $region15: #{tpu_custom_call.1} parent=1 // pred_check_branch
      %2852 = sbr.rel (0) target = $region17
    $region16: #{tpu_custom_call.1} parent=1 // pred_region
      %2854 = dma.done [#allocation3], 16384
    $region17: #{tpu_custom_call.1} parent=1 // pred_fallthru
      _
    %2855 = vsyncpa [#allocation3], 1

</llo_original>
